<compile_context>
chip_gen: v5e
topology: v5e:2x2
jax: 0.10.0
libtpu: 0.0.40
codegen_flags: <defaults>
</compile_context>

<pallas_src>
from functools import partial

import jax
import jax.numpy as jnp
from jax.experimental import pallas as pl
from jax.experimental.pallas import tpu as pltpu


# ---------------------------------------------------------------------------
# Small helpers.
# ---------------------------------------------------------------------------
def _round_up(n, m):
    return (n + m - 1) // m * m


def _vmem_limit():
    """Generation-aware scoped-VMEM limit (do not hardcode 32 MiB)."""
    cap = 128 * 1024 * 1024
    try:
        cap = int(pltpu.get_tpu_info().vmem_capacity_bytes)
    except Exception:
        pass
    # ~3/4 of physical VMEM, capped: ~48 MiB on v7x (64 MiB), ~96-100 MiB on v5e/v6e.
    return int(min(cap * 3 // 4, 100 * 1024 * 1024))


def _pick_tile(l_out):
    """Lane-dense length tiles, as large as reasonable (128..1024)."""
    tl = min(_round_up(l_out, 128), 1024)
    nt = pl.cdiv(l_out, tl)
    tl = _round_up(pl.cdiv(l_out, nt), 128)  # shrink to cut tail waste
    return tl, nt


# ---------------------------------------------------------------------------
# Pass A / C kernel: Conv1d (im2col, single MXU dot) + per-batch channel stats.
# Input x is pre-padded in the wrapper (channels -> mult of 8, left conv padding,
# right zeros up to NT*TL + 128 so the 128-lane halo block is always in bounds).
# ---------------------------------------------------------------------------
def _conv_stats_kernel(xm_ref, xh_ref, w_ref, y_ref, ssum_ref, ssq_ref,
                       *, K, L_out, TL, mxu_dtype):
    t = pl.program_id(1)

    @pl.when(t == 0)
    def _init():
        ssum_ref[...] = jnp.zeros_like(ssum_ref)
        ssq_ref[...] = jnp.zeros_like(ssq_ref)

    xm = xm_ref[0]                                      # (C_in_p, TL)
    if K > 1:
        win = jnp.concatenate([xm, xh_ref[0]], axis=1)  # (C_in_p, TL + 128)
        slab = jnp.concatenate([win[:, k:k + TL] for k in range(K)], axis=0)
    else:
        slab = xm                                       # (K*C_in_p, TL)

    # One MXU dot for the whole tile, f32 accumulate.  (Conv bias omitted on
    # purpose: training-mode BN cancels any per-channel bias exactly.)
    y = jnp.dot(w_ref[...], slab.astype(mxu_dtype),
                preferred_element_type=jnp.float32)     # (C_out_p, TL)

    # Per-batch, lane-dense sum / sumsq over the valid output columns.
    col = t * TL + jax.lax.broadcasted_iota(jnp.int32, (1, TL), 1)
    yv = jnp.where(col < L_out, y, 0.0)
    c = y.shape[0]
    psum = jnp.zeros((c, 128), jnp.float32)
    psq = jnp.zeros((c, 128), jnp.float32)
    for j in range(TL // 128):
        blk = yv[:, j * 128:(j + 1) * 128]
        psum = psum + blk
        psq = psq + blk * blk
    ssum_ref[0] += psum
    ssq_ref[0] += psq

    y_ref[0] = y.astype(y_ref.dtype)


# ---------------------------------------------------------------------------
# Pass B kernel: stage-1 BN + ReLU applied in-register, then Conv1d + stats.
# Reads y1 (raw conv1 output) tiles with 128-lane left/right halo blocks.
# ---------------------------------------------------------------------------
def _bnrelu_conv_stats_kernel(yl_ref, ym_ref, yr_ref, sc_ref, sh_ref, w_ref,
                              y_ref, ssum_ref, ssq_ref,
                              *, K, pad, L_in, L_out, TL, mxu_dtype):
    t = pl.program_id(1)

    @pl.when(t == 0)
    def _init():
        ssum_ref[...] = jnp.zeros_like(ssum_ref)
        ssq_ref[...] = jnp.zeros_like(ssq_ref)

    main = ym_ref[0].astype(jnp.float32)                       # (C1p, TL)
    if pad > 0:
        left = yl_ref[0][:, 128 - pad:].astype(jnp.float32)    # (C1p, pad)
        right = yr_ref[0][:, :pad].astype(jnp.float32)         # (C1p, pad)
        win = jnp.concatenate([left, main, right], axis=1)     # (C1p, TL+2*pad)
    else:
        win = main

    # Fused stage-1 epilogue: BN (one FMA) + ReLU, in registers.
    h = jnp.maximum(win * sc_ref[...] + sh_ref[...], 0.0)
    # Zero every column outside the true stage-1 output length (this also covers
    # the clamped halo blocks at t==0 / t==NT-1 and the tile-rounding tail).
    col_in = (t * TL - pad
              + jax.lax.broadcasted_iota(jnp.int32, (1, win.shape[1]), 1))
    h = jnp.where((col_in >= 0) & (col_in < L_in), h, 0.0)

    if K > 1:
        slab = jnp.concatenate([h[:, k:k + TL] for k in range(K)], axis=0)
    else:
        slab = h
    y = jnp.dot(w_ref[...], slab.astype(mxu_dtype),
                preferred_element_type=jnp.float32)            # (C2p, TL)

    col = t * TL + jax.lax.broadcasted_iota(jnp.int32, (1, TL), 1)
    yv = jnp.where(col < L_out, y, 0.0)
    c = y.shape[0]
    psum = jnp.zeros((c, 128), jnp.float32)
    psq = jnp.zeros((c, 128), jnp.float32)
    for j in range(TL // 128):
        blk = yv[:, j * 128:(j + 1) * 128]
        psum = psum + blk
        psq = psq + blk * blk
    ssum_ref[0] += psum
    ssq_ref[0] += psq

    y_ref[0] = y.astype(y_ref.dtype)


# ---------------------------------------------------------------------------
# Pass D kernel: relu(y*y_scale + r*r_scale + shift)  (main BN, shortcut BN and
# residual add fused into one FMA epilogue).
# ---------------------------------------------------------------------------
def _bn_add_relu_kernel(y_ref, r_ref, ys_ref, rs_ref, sh_ref, o_ref):
    o = (y_ref[...].astype(jnp.float32) * ys_ref[...]
         + r_ref[...].astype(jnp.float32) * rs_ref[...] + sh_ref[...])
    o_ref[...] = jnp.maximum(o, 0.0).astype(o_ref.dtype)


# ---------------------------------------------------------------------------
# Wrappers.
# ---------------------------------------------------------------------------
def conv_stats(x, w, *, padding, mxu_dtype, store_dtype, vmem):
    """Conv1d (no bias) + per-batch channel (sum, sumsq).  x:(B,Cin,L) w:(Cout,Cin,K)."""
    B, C_in, L = x.shape
    C_out, _, K = w.shape
    assert K - 1 <= 128 and padding <= 128
    L_out = L + 2 * padding - K + 1
    TL, NT = _pick_tile(L_out)
    TLd = TL // 128
    C_in_p = _round_up(max(C_in, 8), 8)
    C_out_p = _round_up(max(C_out, 8), 8)

    Lxp = _round_up(max(NT * TL + 128, padding + L), 128)
    x_p = jnp.pad(x, ((0, 0), (0, C_in_p - C_in),
                      (padding, Lxp - padding - L))).astype(mxu_dtype)
    w_p = jnp.pad(w, ((0, C_out_p - C_out), (0, C_in_p - C_in), (0, 0)))
    w2d = jnp.transpose(w_p, (0, 2, 1)).reshape(C_out_p, K * C_in_p).astype(mxu_dtype)

    y, ssum, ssq = pl.pallas_call(
        partial(_conv_stats_kernel, K=K, L_out=L_out, TL=TL, mxu_dtype=mxu_dtype),
        out_shape=(
            jax.ShapeDtypeStruct((B, C_out_p, NT * TL), store_dtype),
            jax.ShapeDtypeStruct((B, C_out_p, 128), jnp.float32),
            jax.ShapeDtypeStruct((B, C_out_p, 128), jnp.float32),
        ),
        grid=(B, NT),
        in_specs=[
            pl.BlockSpec((1, C_in_p, TL), lambda b, t: (b, 0, t)),          # main tile
            pl.BlockSpec((1, C_in_p, 128), lambda b, t: (b, 0, (t + 1) * TLd)),  # halo
            pl.BlockSpec((C_out_p, K * C_in_p), lambda b, t: (0, 0)),       # weights
        ],
        out_specs=(
            pl.BlockSpec((1, C_out_p, TL), lambda b, t: (b, 0, t)),
            pl.BlockSpec((1, C_out_p, 128), lambda b, t: (b, 0, 0)),   # revisited acc
            pl.BlockSpec((1, C_out_p, 128), lambda b, t: (b, 0, 0)),   # revisited acc
        ),
        compiler_params=pltpu.CompilerParams(
            dimension_semantics=("parallel", "arbitrary"),
            vmem_limit_bytes=vmem),
    )(x_p, x_p, w2d)
    return y, ssum, ssq, L_out, TL


def bnrelu_conv_stats(y1, sc1, sh1, w, *, padding, L_in, TL,
                      mxu_dtype, store_dtype, vmem):
    """Fused relu(bn1(.)) -> Conv1d (no bias) + per-batch channel stats."""
    B, C1p, Lp = y1.shape
    NT = Lp // TL
    TLd = TL // 128
    nlb = Lp // 128
    C_out, C_in_w, K = w.shape
    assert C_in_w <= C1p and padding <= 128
    C2p = _round_up(max(C_out, 8), 8)
    L_out = L_in + 2 * padding - K + 1

    w_p = jnp.pad(w, ((0, C2p - C_out), (0, C1p - C_in_w), (0, 0)))
    w2d = jnp.transpose(w_p, (0, 2, 1)).reshape(C2p, K * C1p).astype(mxu_dtype)

    y2, ssum, ssq = pl.pallas_call(
        partial(_bnrelu_conv_stats_kernel, K=K, pad=padding, L_in=L_in,
                L_out=L_out, TL=TL, mxu_dtype=mxu_dtype),
        out_shape=(
            jax.ShapeDtypeStruct((B, C2p, NT * TL), store_dtype),
            jax.ShapeDtypeStruct((B, C2p, 128), jnp.float32),
            jax.ShapeDtypeStruct((B, C2p, 128), jnp.float32),
        ),
        grid=(B, NT),
        in_specs=[
            pl.BlockSpec((1, C1p, 128),
                         lambda b, t: (b, 0, jnp.maximum(t * TLd - 1, 0))),   # left halo
            pl.BlockSpec((1, C1p, TL), lambda b, t: (b, 0, t)),               # main tile
            pl.BlockSpec((1, C1p, 128),
                         lambda b, t: (b, 0, jnp.minimum((t + 1) * TLd, nlb - 1))),  # right halo
            pl.BlockSpec((C1p, 1), lambda b, t: (0, 0)),                      # bn1 scale
            pl.BlockSpec((C1p, 1), lambda b, t: (0, 0)),                      # bn1 shift
            pl.BlockSpec((C2p, K * C1p), lambda b, t: (0, 0)),                # weights
        ],
        out_specs=(
            pl.BlockSpec((1, C2p, TL), lambda b, t: (b, 0, t)),
            pl.BlockSpec((1, C2p, 128), lambda b, t: (b, 0, 0)),
            pl.BlockSpec((1, C2p, 128), lambda b, t: (b, 0, 0)),
        ),
        compiler_params=pltpu.CompilerParams(
            dimension_semantics=("parallel", "arbitrary"),
            vmem_limit_bytes=vmem),
    )(y1, y1, y1, sc1, sh1, w2d)
    return y2, ssum, ssq, L_out


def bn_scale_shift(ssum, ssq, gamma, beta, count, eps, c_real):
    """Fold training-mode BN into per-channel scale/shift from the partial sums."""
    s = jnp.sum(ssum, axis=(0, 2))                 # (Cp,)
    q = jnp.sum(ssq, axis=(0, 2))
    cp = s.shape[0]
    gamma_p = jnp.pad(gamma.astype(jnp.float32), (0, cp - c_real))
    beta_p = jnp.pad(beta.astype(jnp.float32), (0, cp - c_real))
    mean = s / count
    var = jnp.maximum(q / count - mean * mean, 0.0)
    scale = gamma_p * jax.lax.rsqrt(var + eps)
    shift = beta_p - mean * scale
    return scale.reshape(cp, 1), shift.reshape(cp, 1)


def bn_add_relu(y2, r, y_scale, r_scale, shift, *, TL, L_out, C_out, out_dtype, vmem):
    """relu(y2*y_scale + r*r_scale + shift), written directly at the final shape."""
    B, C2p, Lp = y2.shape
    NT = Lp // TL
    BB = max(1, min(B, (2 << 20) // max(1, C2p * TL * 4)))   # >=~2MiB per block stream
    return pl.pallas_call(
        _bn_add_relu_kernel,
        out_shape=jax.ShapeDtypeStruct((B, C_out, L_out), out_dtype),
        grid=(pl.cdiv(B, BB), NT),
        in_specs=[
            pl.BlockSpec((BB, C2p, TL), lambda b, t: (b, 0, t)),
            pl.BlockSpec((BB, C2p, TL), lambda b, t: (b, 0, t)),
            pl.BlockSpec((C2p, 1), lambda b, t: (0, 0)),
            pl.BlockSpec((C2p, 1), lambda b, t: (0, 0)),
            pl.BlockSpec((C2p, 1), lambda b, t: (0, 0)),
        ],
        out_specs=pl.BlockSpec((BB, C2p, TL), lambda b, t: (b, 0, t)),
        compiler_params=pltpu.CompilerParams(
            dimension_semantics=("parallel", "parallel"),
            vmem_limit_bytes=vmem),
    )(y2, r, y_scale, r_scale, shift)


# ---------------------------------------------------------------------------
# Full forward.
# ---------------------------------------------------------------------------
@partial(jax.jit, static_argnames=("padding", "eps", "fast_dtype"))
def res_1d_forward(x, params, *, padding, eps=1e-5, fast_dtype=None):
    """Res_1d forward: relu( bn2(conv2(relu(bn1(conv1(x))))) + shortcut ).

    shortcut = bn3(conv3(x)) if 'w3' in params (channel change) else x.
    fast_dtype=jnp.bfloat16 enables bf16 MXU operands and bf16 intermediates
    (BN statistics always from the f32 accumulator); default is exact f32.
    """
    mxu_dt = jnp.float32 if fast_dtype is None else fast_dtype
    store_dt = jnp.float32 if fast_dtype is None else fast_dtype
    vmem = _vmem_limit()

    B, C_in, L = x.shape
    C_out, _, K = params["w1"].shape
    assert K == 2 * padding + 1, "residual add requires 'same'-style convolutions"
    diff = "w3" in params

    # pass A: conv1 + stats1
    y1, s1, q1, L1, TL = conv_stats(x, params["w1"], padding=padding,
                                    mxu_dtype=mxu_dt, store_dtype=store_dt, vmem=vmem)
    sc1, sh1 = bn_scale_shift(s1, q1, params["g1"], params["beta1"], B * L1, eps, C_out)

    # pass B: fused bn1+relu -> conv2 + stats2  (no h intermediate, no re-pad)
    y2, s2, q2, L2 = bnrelu_conv_stats(y1, sc1, sh1, params["w2"], padding=padding,
                                       L_in=L1, TL=TL, mxu_dtype=mxu_dt,
                                       store_dtype=store_dt, vmem=vmem)
    sc2, sh2 = bn_scale_shift(s2, q2, params["g2"], params["beta2"], B * L2, eps, C_out)

    # shortcut branch
    if diff:
        y3, s3, q3, L3, _ = conv_stats(x, params["w3"], padding=padding,
                                       mxu_dtype=mxu_dt, store_dtype=store_dt, vmem=vmem)
        sc3, sh3 = bn_scale_shift(s3, q3, params["g3"], params["beta3"], B * L3, eps, C_out)
        r, r_scale, shift = y3, sc3, sh2 + sh3
    else:
        # identity shortcut: x fed directly (masked edge blocks), unit scale.
        C2p = y2.shape[1]
        r = x
        r_scale = (jnp.arange(C2p) < C_in).astype(jnp.float32).reshape(C2p, 1)
        shift = sh2

    return bn_add_relu(y2, r, sc2, r_scale, shift, TL=TL, L_out=L2,
                       C_out=C_out, out_dtype=x.dtype, vmem=vmem)


# ---------------------------------------------------------------------------
# Pure-JAX reference matching the PyTorch module (training-mode BatchNorm1d,
# conv biases INCLUDED — they must cancel against the kernel path).
# ---------------------------------------------------------------------------
def _ref_conv1d(x, w, b, padding):
    y = jax.lax.conv_general_dilated(
        x, w, window_strides=(1,), padding=[(padding, padding)],
        dimension_numbers=("NCH", "OIH", "NCH"))
    return y + b[None, :, None]


def _ref_bn_train(y, gamma, beta, eps=1e-5):
    mean = jnp.mean(y, axis=(0, 2), keepdims=True)
    var = jnp.mean((y - mean) ** 2, axis=(0, 2), keepdims=True)
    return (y - mean) * jax.lax.rsqrt(var + eps) * gamma[None, :, None] + beta[None, :, None]


def res_1d_reference(x, params, *, padding, eps=1e-5):
    h = jnp.maximum(
        _ref_bn_train(_ref_conv1d(x, params["w1"], params["cb1"], padding),
                      params["g1"], params["beta1"], eps), 0.0)
    out = _ref_bn_train(_ref_conv1d(h, params["w2"], params["cb2"], padding),
                        params["g2"], params["beta2"], eps)
    if "w3" in params:
        sc = _ref_bn_train(_ref_conv1d(x, params["w3"], params["cb3"], padding),
                           params["g3"], params["beta3"], eps)
    else:
        sc = x
    return jnp.maximum(out + sc, 0.0)


if __name__ == "__main__":
    # TODO(synk): BatchNorm running_mean/running_var buffer updates (training-time
    # side effect only; they do not affect this forward pass) are not implemented.
    B, C_in, C_out, L, K, PAD = 2, 4, 8, 16, 3, 1

    key = jax.random.PRNGKey(0)
    ks = jax.random.split(key, 16)

    def _mk(i, shape, scale=0.1):
        return scale * jax.random.normal(ks[i], shape, dtype=jnp.float32)

    x = jax.random.normal(ks[0], (B, C_in, L), dtype=jnp.float32)

    params = dict(
        w1=_mk(1, (C_out, C_in, K)), cb1=_mk(2, (C_out,)),
        g1=1.0 + _mk(3, (C_out,)), beta1=_mk(4, (C_out,)),
        w2=_mk(5, (C_out, C_out, K)), cb2=_mk(6, (C_out,)),
        g2=1.0 + _mk(7, (C_out,)), beta2=_mk(8, (C_out,)),
        w3=_mk(9, (C_out, C_in, K)), cb3=_mk(10, (C_out,)),
        g3=1.0 + _mk(11, (C_out,)), beta3=_mk(12, (C_out,)),
    )

    # Case 1: input_channels != output_channels (conv_3/bn_3 shortcut active).
    out = jax.block_until_ready(res_1d_forward(x, params, padding=PAD))
    ref = res_1d_reference(x, params, padding=PAD)
    assert out.shape == (B, C_out, L), out.shape
    assert jnp.allclose(out, ref, atol=1e-4, rtol=1e-4), "mismatch (diff=True)"

    # Case 2: input_channels == output_channels (identity shortcut, no re-pad of x).
    x2 = jax.random.normal(ks[13], (B, C_out, L), dtype=jnp.float32)
    params2 = {k: v for k, v in params.items()
               if k not in ("w3", "cb3", "g3", "beta3")}
    params2["w1"] = _mk(14, (C_out, C_out, K))
    out2 = jax.block_until_ready(res_1d_forward(x2, params2, padding=PAD))
    ref2 = res_1d_reference(x2, params2, padding=PAD)
    assert out2.shape == (B, C_out, L), out2.shape
    assert jnp.allclose(out2, ref2, atol=1e-4, rtol=1e-4), "mismatch (diff=False)"

    # Case 3: bf16 fast path (bf16 MXU operands + bf16 intermediates, f32 stats).
    out_fast = jax.block_until_ready(
        res_1d_forward(x, params, padding=PAD, fast_dtype=jnp.bfloat16))
    assert out_fast.shape == (B, C_out, L), out_fast.shape
    assert jnp.allclose(out_fast, ref, atol=1e-1, rtol=1e-1), "mismatch (bf16 path)"

    print("KERNEL_OK")
</pallas_src>

<mosaic_0001>
module attributes {stable_mosaic.version = 11 : i64} {
  func.func @_bnrelu_conv_stats_kernel(%arg0: i32, %arg1: i32, %arg2: memref<1x8x128xf32, #tpu.memory_space<vmem>>, %arg3: memref<1x8x128xf32, #tpu.memory_space<vmem>>, %arg4: memref<1x8x128xf32, #tpu.memory_space<vmem>>, %arg5: memref<8x1xf32, #tpu.memory_space<vmem>>, %arg6: memref<8x1xf32, #tpu.memory_space<vmem>>, %arg7: memref<8x24xf32, #tpu.memory_space<vmem>>, %arg8: memref<1x8x128xf32, #tpu.memory_space<vmem>>, %arg9: memref<1x8x128xf32, #tpu.memory_space<vmem>>, %arg10: memref<1x8x128xf32, #tpu.memory_space<vmem>>) attributes {dimension_semantics = [#tpu.dimension_semantics<parallel>, #tpu.dimension_semantics<arbitrary>], iteration_bounds = array<i64: 2, 1>, scalar_prefetch = 0 : i64, scratch_operands = 0 : i64, tpu.core_type = #tpu.core_type<tc>, window_params = [{transform_indices = @transform_0, window_bounds = array<i64: 1, 8, 128>}, {transform_indices = @transform_1, window_bounds = array<i64: 1, 8, 128>}, {transform_indices = @transform_2, window_bounds = array<i64: 1, 8, 128>}, {pipeline_mode = #tpu.pipeline_mode<synchronous>, transform_indices = @transform_3, window_bounds = array<i64: 8, 1>}, {pipeline_mode = #tpu.pipeline_mode<synchronous>, transform_indices = @transform_4, window_bounds = array<i64: 8, 1>}, {pipeline_mode = #tpu.pipeline_mode<synchronous>, transform_indices = @transform_5, window_bounds = array<i64: 8, 24>}, {transform_indices = @transform_6, window_bounds = array<i64: 1, 8, 128>}, {transform_indices = @transform_7, window_bounds = array<i64: 1, 8, 128>}, {transform_indices = @transform_8, window_bounds = array<i64: 1, 8, 128>}]} {
    %c0_i32 = arith.constant 0 : i32
    %0 = arith.cmpi eq, %arg1, %c0_i32 : i32
    %1 = arith.extui %0 : i1 to i32
    %c0_i32_0 = arith.constant 0 : i32
    %2 = arith.cmpi ne, %1, %c0_i32_0 : i32
    scf.if %2 {
      %cst_38 = arith.constant 0.000000e+00 : f32
      %70 = vector.broadcast %cst_38 : f32 to vector<1x8x128xf32>
      %c0_39 = arith.constant 0 : index
      %c0_40 = arith.constant 0 : index
      %c0_41 = arith.constant 0 : index
      %71 = vector.load %arg9[%c0_39, %c0_40, %c0_41] : memref<1x8x128xf32, #tpu.memory_space<vmem>>, vector<1x8x128xf32>
      tpu.vector_store %arg9[%c0_39, %c0_40, %c0_41], %70 {strides = array<i32>} : memref<1x8x128xf32, #tpu.memory_space<vmem>>, vector<1x8x128xf32>,
      %cst_42 = arith.constant 0.000000e+00 : f32
      %72 = vector.broadcast %cst_42 : f32 to vector<1x8x128xf32>
      %c0_43 = arith.constant 0 : index
      %c0_44 = arith.constant 0 : index
      %c0_45 = arith.constant 0 : index
      %73 = vector.load %arg10[%c0_43, %c0_44, %c0_45] : memref<1x8x128xf32, #tpu.memory_space<vmem>>, vector<1x8x128xf32>
      tpu.vector_store %arg10[%c0_43, %c0_44, %c0_45], %72 {strides = array<i32>} : memref<1x8x128xf32, #tpu.memory_space<vmem>>, vector<1x8x128xf32>,
    } else {
    }
    %c0 = arith.constant 0 : index
    %c0_1 = arith.constant 0 : index
    %c0_2 = arith.constant 0 : index
    %3 = vector.load %arg3[%c0, %c0_1, %c0_2] : memref<1x8x128xf32, #tpu.memory_space<vmem>>, vector<1x8x128xf32>
    %4 = vector.shape_cast %3 : vector<1x8x128xf32> to vector<8x128xf32>
    %c0_3 = arith.constant 0 : index
    %c0_4 = arith.constant 0 : index
    %c0_5 = arith.constant 0 : index
    %5 = vector.load %arg2[%c0_3, %c0_4, %c0_5] : memref<1x8x128xf32, #tpu.memory_space<vmem>>, vector<1x8x128xf32>
    %6 = vector.shape_cast %5 : vector<1x8x128xf32> to vector<8x128xf32>
    %7 = vector.extract_strided_slice %6 {offsets = [0, 127], sizes = [8, 1], strides = [1, 1]} : vector<8x128xf32> to vector<8x1xf32>
    %c0_6 = arith.constant 0 : index
    %c0_7 = arith.constant 0 : index
    %c0_8 = arith.constant 0 : index
    %8 = vector.load %arg4[%c0_6, %c0_7, %c0_8] : memref<1x8x128xf32, #tpu.memory_space<vmem>>, vector<1x8x128xf32>
    %9 = vector.shape_cast %8 : vector<1x8x128xf32> to vector<8x128xf32>
    %10 = vector.extract_strided_slice %9 {offsets = [0, 0], sizes = [8, 1], strides = [1, 1]} : vector<8x128xf32> to vector<8x1xf32>
    %11 = tpu.concatenate %7, %4, %10 in 1 : vector<8x1xf32>, vector<8x128xf32>, vector<8x1xf32> -> vector<8x130xf32>
    %c0_9 = arith.constant 0 : index
    %c0_10 = arith.constant 0 : index
    %12 = vector.load %arg5[%c0_9, %c0_10] : memref<8x1xf32, #tpu.memory_space<vmem>>, vector<8x1xf32>
    %13 = vector.broadcast %12 : vector<8x1xf32> to vector<8x130xf32>
    %14 = arith.mulf %11, %13 : vector<8x130xf32>
    %c0_11 = arith.constant 0 : index
    %c0_12 = arith.constant 0 : index
    %15 = vector.load %arg6[%c0_11, %c0_12] : memref<8x1xf32, #tpu.memory_space<vmem>>, vector<8x1xf32>
    %16 = vector.broadcast %15 : vector<8x1xf32> to vector<8x130xf32>
    %17 = arith.addf %14, %16 : vector<8x130xf32>
    %cst = arith.constant 0.000000e+00 : f32
    %18 = vector.broadcast %cst : f32 to vector<8x130xf32>
    %19 = arith.maximumf %17, %18 : vector<8x130xf32>
    %c128_i32 = arith.constant 128 : i32
    %20 = arith.muli %arg1, %c128_i32 : i32
    %c1_i32 = arith.constant 1 : i32
    %21 = arith.subi %20, %c1_i32 : i32
    %22 = tpu.iota {dimensions = array<i32: 1>} : vector<1x130xi32>
    %23 = vector.broadcast %21 : i32 to vector<1x130xi32>
    %24 = arith.addi %23, %22 : vector<1x130xi32>
    %c0_i32_13 = arith.constant 0 : i32
    %25 = vector.broadcast %c0_i32_13 : i32 to vector<1x130xi32>
    %26 = arith.cmpi sge, %24, %25 : vector<1x130xi32>
    %c16_i32 = arith.constant 16 : i32
    %27 = vector.broadcast %c16_i32 : i32 to vector<1x130xi32>
    %28 = arith.cmpi slt, %24, %27 : vector<1x130xi32>
    %29 = arith.andi %26, %28 : vector<1x130xi1>
    %cst_14 = arith.constant 0.000000e+00 : f32
    %30 = vector.shape_cast %29 : vector<1x130xi1> to vector<1x130xi1>
    %31 = vector.broadcast %30 : vector<1x130xi1> to vector<8x130xi1>
    %32 = vector.broadcast %cst_14 : f32 to vector<8x130xf32>
    %33 = arith.select %31, %19, %32 : vector<8x130xi1>, vector<8x130xf32>
    %34 = vector.extract_strided_slice %33 {offsets = [0, 0], sizes = [8, 128], strides = [1, 1]} : vector<8x130xf32> to vector<8x128xf32>
    %35 = vector.extract_strided_slice %33 {offsets = [0, 1], sizes = [8, 128], strides = [1, 1]} : vector<8x130xf32> to vector<8x128xf32>
    %36 = vector.extract_strided_slice %33 {offsets = [0, 2], sizes = [8, 128], strides = [1, 1]} : vector<8x130xf32> to vector<8x128xf32>
    %37 = tpu.concatenate %34, %35, %36 in 0 : vector<8x128xf32>, vector<8x128xf32>, vector<8x128xf32> -> vector<24x128xf32>
    %c0_15 = arith.constant 0 : index
    %c0_16 = arith.constant 0 : index
    %38 = vector.load %arg7[%c0_15, %c0_16] : memref<8x24xf32, #tpu.memory_space<vmem>>, vector<8x24xf32>
    %cst_17 = arith.constant dense<0.000000e+00> : vector<8x128xf32>
    %39 = tpu.matmul %38, %37, %cst_17 {dimension_numbers = #tpu.dot_dimension_numbers<[1], [0], [0], [1], [0, 0, 1, 1], [], []>} : vector<8x24xf32>, vector<24x128xf32>, vector<8x128xf32> -> vector<8x128xf32>
    %c128_i32_18 = arith.constant 128 : i32
    %40 = arith.muli %arg1, %c128_i32_18 : i32
    %41 = tpu.iota {dimensions = array<i32: 1>} : vector<1x128xi32>
    %42 = vector.broadcast %40 : i32 to vector<1x128xi32>
    %43 = arith.addi %42, %41 : vector<1x128xi32>
    %c16_i32_19 = arith.constant 16 : i32
    %44 = vector.broadcast %c16_i32_19 : i32 to vector<1x128xi32>
    %45 = arith.cmpi slt, %43, %44 : vector<1x128xi32>
    %cst_20 = arith.constant 0.000000e+00 : f32
    %46 = vector.shape_cast %45 : vector<1x128xi1> to vector<1x128xi1>
    %47 = vector.broadcast %46 : vector<1x128xi1> to vector<8x128xi1>
    %48 = vector.broadcast %cst_20 : f32 to vector<8x128xf32>
    %49 = arith.select %47, %39, %48 : vector<8x128xi1>, vector<8x128xf32>
    %cst_21 = arith.constant 0.000000e+00 : f32
    %50 = vector.broadcast %cst_21 : f32 to vector<8x128xf32>
    %cst_22 = arith.constant 0.000000e+00 : f32
    %51 = vector.broadcast %cst_22 : f32 to vector<8x128xf32>
    %52 = arith.addf %50, %49 : vector<8x128xf32>
    %53 = arith.mulf %49, %49 : vector<8x128xf32>
    %54 = arith.addf %51, %53 : vector<8x128xf32>
    %c0_23 = arith.constant 0 : index
    %c0_24 = arith.constant 0 : index
    %c0_25 = arith.constant 0 : index
    %55 = vector.load %arg9[%c0_23, %c0_24, %c0_25] : memref<1x8x128xf32, #tpu.memory_space<vmem>>, vector<1x8x128xf32>
    %56 = vector.shape_cast %55 : vector<1x8x128xf32> to vector<8x128xf32>
    %57 = arith.addf %56, %52 : vector<8x128xf32>
    %c0_26 = arith.constant 0 : index
    %c0_27 = arith.constant 0 : index
    %c0_28 = arith.constant 0 : index
    %58 = vector.load %arg9[%c0_26, %c0_27, %c0_28] : memref<1x8x128xf32, #tpu.memory_space<vmem>>, vector<1x8x128xf32>
    %59 = vector.shape_cast %58 : vector<1x8x128xf32> to vector<8x128xf32>
    %60 = vector.shape_cast %57 : vector<8x128xf32> to vector<1x8x128xf32>
    tpu.vector_store %arg9[%c0_26, %c0_27, %c0_28], %60 {strides = array<i32>} : memref<1x8x128xf32, #tpu.memory_space<vmem>>, vector<1x8x128xf32>,
    %c0_29 = arith.constant 0 : index
    %c0_30 = arith.constant 0 : index
    %c0_31 = arith.constant 0 : index
    %61 = vector.load %arg10[%c0_29, %c0_30, %c0_31] : memref<1x8x128xf32, #tpu.memory_space<vmem>>, vector<1x8x128xf32>
    %62 = vector.shape_cast %61 : vector<1x8x128xf32> to vector<8x128xf32>
    %63 = arith.addf %62, %54 : vector<8x128xf32>
    %c0_32 = arith.constant 0 : index
    %c0_33 = arith.constant 0 : index
    %c0_34 = arith.constant 0 : index
    %64 = vector.load %arg10[%c0_32, %c0_33, %c0_34] : memref<1x8x128xf32, #tpu.memory_space<vmem>>, vector<1x8x128xf32>
    %65 = vector.shape_cast %64 : vector<1x8x128xf32> to vector<8x128xf32>
    %66 = vector.shape_cast %63 : vector<8x128xf32> to vector<1x8x128xf32>
    tpu.vector_store %arg10[%c0_32, %c0_33, %c0_34], %66 {strides = array<i32>} : memref<1x8x128xf32, #tpu.memory_space<vmem>>, vector<1x8x128xf32>,
    %c0_35 = arith.constant 0 : index
    %c0_36 = arith.constant 0 : index
    %c0_37 = arith.constant 0 : index
    %67 = vector.load %arg8[%c0_35, %c0_36, %c0_37] : memref<1x8x128xf32, #tpu.memory_space<vmem>>, vector<1x8x128xf32>
    %68 = vector.shape_cast %67 : vector<1x8x128xf32> to vector<8x128xf32>
    %69 = vector.shape_cast %39 : vector<8x128xf32> to vector<1x8x128xf32>
    tpu.vector_store %arg8[%c0_35, %c0_36, %c0_37], %69 {strides = array<i32>} : memref<1x8x128xf32, #tpu.memory_space<vmem>>, vector<1x8x128xf32>,
    return
  }
  func.func @transform_0(%arg0: i32, %arg1: i32) -> (i32, i32, i32) {
    %c1_i32 = arith.constant 1 : i32
    %0 = arith.muli %arg1, %c1_i32 : i32
    %c1_i32_0 = arith.constant 1 : i32
    %1 = arith.subi %0, %c1_i32_0 : i32
    %c0_i32 = arith.constant 0 : i32
    %2 = arith.maxsi %1, %c0_i32 : i32
    %c0_i32_1 = arith.constant 0 : i32
    %c0_i32_2 = arith.constant 0 : i32
    return %arg0, %c0_i32_1, %2 : i32, i32, i32
  }
  func.func @transform_1(%arg0: i32, %arg1: i32) -> (i32, i32, i32) {
    %c0_i32 = arith.constant 0 : i32
    %c0_i32_0 = arith.constant 0 : i32
    return %arg0, %c0_i32, %arg1 : i32, i32, i32
  }
  func.func @transform_2(%arg0: i32, %arg1: i32) -> (i32, i32, i32) {
    %c1_i32 = arith.constant 1 : i32
    %0 = arith.addi %arg1, %c1_i32 : i32
    %c1_i32_0 = arith.constant 1 : i32
    %1 = arith.muli %0, %c1_i32_0 : i32
    %c0_i32 = arith.constant 0 : i32
    %2 = arith.minsi %1, %c0_i32 : i32
    %c0_i32_1 = arith.constant 0 : i32
    %c0_i32_2 = arith.constant 0 : i32
    return %arg0, %c0_i32_1, %2 : i32, i32, i32
  }
  func.func @transform_3(%arg0: i32, %arg1: i32) -> (i32, i32) {
    %c0_i32 = arith.constant 0 : i32
    %c0_i32_0 = arith.constant 0 : i32
    %c0_i32_1 = arith.constant 0 : i32
    return %c0_i32, %c0_i32_0 : i32, i32
  }
  func.func @transform_4(%arg0: i32, %arg1: i32) -> (i32, i32) {
    %c0_i32 = arith.constant 0 : i32
    %c0_i32_0 = arith.constant 0 : i32
    %c0_i32_1 = arith.constant 0 : i32
    return %c0_i32, %c0_i32_0 : i32, i32
  }
  func.func @transform_5(%arg0: i32, %arg1: i32) -> (i32, i32) {
    %c0_i32 = arith.constant 0 : i32
    %c0_i32_0 = arith.constant 0 : i32
    %c0_i32_1 = arith.constant 0 : i32
    return %c0_i32, %c0_i32_0 : i32, i32
  }
  func.func @transform_6(%arg0: i32, %arg1: i32) -> (i32, i32, i32) {
    %c0_i32 = arith.constant 0 : i32
    %c0_i32_0 = arith.constant 0 : i32
    return %arg0, %c0_i32, %arg1 : i32, i32, i32
  }
  func.func @transform_7(%arg0: i32, %arg1: i32) -> (i32, i32, i32) {
    %c0_i32 = arith.constant 0 : i32
    %c0_i32_0 = arith.constant 0 : i32
    %c0_i32_1 = arith.constant 0 : i32
    return %arg0, %c0_i32, %c0_i32_0 : i32, i32, i32
  }
  func.func @transform_8(%arg0: i32, %arg1: i32) -> (i32, i32, i32) {
    %c0_i32 = arith.constant 0 : i32
    %c0_i32_0 = arith.constant 0 : i32
    %c0_i32_1 = arith.constant 0 : i32
    return %arg0, %c0_i32, %c0_i32_0 : i32, i32, i32
  }
}

module attributes {stable_mosaic.version = 11 : i64} {
  func.func @_conv_stats_kernel(%arg0: i32, %arg1: i32, %arg2: memref<1x8x128xf32, #tpu.memory_space<vmem>>, %arg3: memref<1x8x128xf32, #tpu.memory_space<vmem>>, %arg4: memref<8x24xf32, #tpu.memory_space<vmem>>, %arg5: memref<1x8x128xf32, #tpu.memory_space<vmem>>, %arg6: memref<1x8x128xf32, #tpu.memory_space<vmem>>, %arg7: memref<1x8x128xf32, #tpu.memory_space<vmem>>) attributes {dimension_semantics = [#tpu.dimension_semantics<parallel>, #tpu.dimension_semantics<arbitrary>], iteration_bounds = array<i64: 2, 1>, scalar_prefetch = 0 : i64, scratch_operands = 0 : i64, tpu.core_type = #tpu.core_type<tc>, window_params = [{transform_indices = @transform_0, window_bounds = array<i64: 1, 8, 128>}, {transform_indices = @transform_1, window_bounds = array<i64: 1, 8, 128>}, {pipeline_mode = #tpu.pipeline_mode<synchronous>, transform_indices = @transform_2, window_bounds = array<i64: 8, 24>}, {transform_indices = @transform_3, window_bounds = array<i64: 1, 8, 128>}, {transform_indices = @transform_4, window_bounds = array<i64: 1, 8, 128>}, {transform_indices = @transform_5, window_bounds = array<i64: 1, 8, 128>}]} {
    %c0_i32 = arith.constant 0 : i32
    %0 = arith.cmpi eq, %arg1, %c0_i32 : i32
    %1 = arith.extui %0 : i1 to i32
    %c0_i32_0 = arith.constant 0 : i32
    %2 = arith.cmpi ne, %1, %c0_i32_0 : i32
    scf.if %2 {
      %cst_26 = arith.constant 0.000000e+00 : f32
      %44 = vector.broadcast %cst_26 : f32 to vector<1x8x128xf32>
      %c0_27 = arith.constant 0 : index
      %c0_28 = arith.constant 0 : index
      %c0_29 = arith.constant 0 : index
      %45 = vector.load %arg6[%c0_27, %c0_28, %c0_29] : memref<1x8x128xf32, #tpu.memory_space<vmem>>, vector<1x8x128xf32>
      tpu.vector_store %arg6[%c0_27, %c0_28, %c0_29], %44 {strides = array<i32>} : memref<1x8x128xf32, #tpu.memory_space<vmem>>, vector<1x8x128xf32>,
      %cst_30 = arith.constant 0.000000e+00 : f32
      %46 = vector.broadcast %cst_30 : f32 to vector<1x8x128xf32>
      %c0_31 = arith.constant 0 : index
      %c0_32 = arith.constant 0 : index
      %c0_33 = arith.constant 0 : index
      %47 = vector.load %arg7[%c0_31, %c0_32, %c0_33] : memref<1x8x128xf32, #tpu.memory_space<vmem>>, vector<1x8x128xf32>
      tpu.vector_store %arg7[%c0_31, %c0_32, %c0_33], %46 {strides = array<i32>} : memref<1x8x128xf32, #tpu.memory_space<vmem>>, vector<1x8x128xf32>,
    } else {
    }
    %c0 = arith.constant 0 : index
    %c0_1 = arith.constant 0 : index
    %c0_2 = arith.constant 0 : index
    %3 = vector.load %arg2[%c0, %c0_1, %c0_2] : memref<1x8x128xf32, #tpu.memory_space<vmem>>, vector<1x8x128xf32>
    %4 = vector.shape_cast %3 : vector<1x8x128xf32> to vector<8x128xf32>
    %c0_3 = arith.constant 0 : index
    %c0_4 = arith.constant 0 : index
    %c0_5 = arith.constant 0 : index
    %5 = vector.load %arg3[%c0_3, %c0_4, %c0_5] : memref<1x8x128xf32, #tpu.memory_space<vmem>>, vector<1x8x128xf32>
    %6 = vector.shape_cast %5 : vector<1x8x128xf32> to vector<8x128xf32>
    %7 = tpu.concatenate %4, %6 in 1 : vector<8x128xf32>, vector<8x128xf32> -> vector<8x256xf32>
    %8 = vector.extract_strided_slice %7 {offsets = [0, 0], sizes = [8, 128], strides = [1, 1]} : vector<8x256xf32> to vector<8x128xf32>
    %9 = vector.extract_strided_slice %7 {offsets = [0, 1], sizes = [8, 128], strides = [1, 1]} : vector<8x256xf32> to vector<8x128xf32>
    %10 = vector.extract_strided_slice %7 {offsets = [0, 2], sizes = [8, 128], strides = [1, 1]} : vector<8x256xf32> to vector<8x128xf32>
    %11 = tpu.concatenate %8, %9, %10 in 0 : vector<8x128xf32>, vector<8x128xf32>, vector<8x128xf32> -> vector<24x128xf32>
    %c0_6 = arith.constant 0 : index
    %c0_7 = arith.constant 0 : index
    %12 = vector.load %arg4[%c0_6, %c0_7] : memref<8x24xf32, #tpu.memory_space<vmem>>, vector<8x24xf32>
    %cst = arith.constant dense<0.000000e+00> : vector<8x128xf32>
    %13 = tpu.matmul %12, %11, %cst {dimension_numbers = #tpu.dot_dimension_numbers<[1], [0], [0], [1], [0, 0, 1, 1], [], []>} : vector<8x24xf32>, vector<24x128xf32>, vector<8x128xf32> -> vector<8x128xf32>
    %c128_i32 = arith.constant 128 : i32
    %14 = arith.muli %arg1, %c128_i32 : i32
    %15 = tpu.iota {dimensions = array<i32: 1>} : vector<1x128xi32>
    %16 = vector.broadcast %14 : i32 to vector<1x128xi32>
    %17 = arith.addi %16, %15 : vector<1x128xi32>
    %c16_i32 = arith.constant 16 : i32
    %18 = vector.broadcast %c16_i32 : i32 to vector<1x128xi32>
    %19 = arith.cmpi slt, %17, %18 : vector<1x128xi32>
    %cst_8 = arith.constant 0.000000e+00 : f32
    %20 = vector.shape_cast %19 : vector<1x128xi1> to vector<1x128xi1>
    %21 = vector.broadcast %20 : vector<1x128xi1> to vector<8x128xi1>
    %22 = vector.broadcast %cst_8 : f32 to vector<8x128xf32>
    %23 = arith.select %21, %13, %22 : vector<8x128xi1>, vector<8x128xf32>
    %cst_9 = arith.constant 0.000000e+00 : f32
    %24 = vector.broadcast %cst_9 : f32 to vector<8x128xf32>
    %cst_10 = arith.constant 0.000000e+00 : f32
    %25 = vector.broadcast %cst_10 : f32 to vector<8x128xf32>
    %26 = arith.addf %24, %23 : vector<8x128xf32>
    %27 = arith.mulf %23, %23 : vector<8x128xf32>
    %28 = arith.addf %25, %27 : vector<8x128xf32>
    %c0_11 = arith.constant 0 : index
    %c0_12 = arith.constant 0 : index
    %c0_13 = arith.constant 0 : index
    %29 = vector.load %arg6[%c0_11, %c0_12, %c0_13] : memref<1x8x128xf32, #tpu.memory_space<vmem>>, vector<1x8x128xf32>
    %30 = vector.shape_cast %29 : vector<1x8x128xf32> to vector<8x128xf32>
    %31 = arith.addf %30, %26 : vector<8x128xf32>
    %c0_14 = arith.constant 0 : index
    %c0_15 = arith.constant 0 : index
    %c0_16 = arith.constant 0 : index
    %32 = vector.load %arg6[%c0_14, %c0_15, %c0_16] : memref<1x8x128xf32, #tpu.memory_space<vmem>>, vector<1x8x128xf32>
    %33 = vector.shape_cast %32 : vector<1x8x128xf32> to vector<8x128xf32>
    %34 = vector.shape_cast %31 : vector<8x128xf32> to vector<1x8x128xf32>
    tpu.vector_store %arg6[%c0_14, %c0_15, %c0_16], %34 {strides = array<i32>} : memref<1x8x128xf32, #tpu.memory_space<vmem>>, vector<1x8x128xf32>,
    %c0_17 = arith.constant 0 : index
    %c0_18 = arith.constant 0 : index
    %c0_19 = arith.constant 0 : index
    %35 = vector.load %arg7[%c0_17, %c0_18, %c0_19] : memref<1x8x128xf32, #tpu.memory_space<vmem>>, vector<1x8x128xf32>
    %36 = vector.shape_cast %35 : vector<1x8x128xf32> to vector<8x128xf32>
    %37 = arith.addf %36, %28 : vector<8x128xf32>
    %c0_20 = arith.constant 0 : index
    %c0_21 = arith.constant 0 : index
    %c0_22 = arith.constant 0 : index
    %38 = vector.load %arg7[%c0_20, %c0_21, %c0_22] : memref<1x8x128xf32, #tpu.memory_space<vmem>>, vector<1x8x128xf32>
    %39 = vector.shape_cast %38 : vector<1x8x128xf32> to vector<8x128xf32>
    %40 = vector.shape_cast %37 : vector<8x128xf32> to vector<1x8x128xf32>
    tpu.vector_store %arg7[%c0_20, %c0_21, %c0_22], %40 {strides = array<i32>} : memref<1x8x128xf32, #tpu.memory_space<vmem>>, vector<1x8x128xf32>,
    %c0_23 = arith.constant 0 : index
    %c0_24 = arith.constant 0 : index
    %c0_25 = arith.constant 0 : index
    %41 = vector.load %arg5[%c0_23, %c0_24, %c0_25] : memref<1x8x128xf32, #tpu.memory_space<vmem>>, vector<1x8x128xf32>
    %42 = vector.shape_cast %41 : vector<1x8x128xf32> to vector<8x128xf32>
    %43 = vector.shape_cast %13 : vector<8x128xf32> to vector<1x8x128xf32>
    tpu.vector_store %arg5[%c0_23, %c0_24, %c0_25], %43 {strides = array<i32>} : memref<1x8x128xf32, #tpu.memory_space<vmem>>, vector<1x8x128xf32>,
    return
  }
  func.func @transform_0(%arg0: i32, %arg1: i32) -> (i32, i32, i32) {
    %c0_i32 = arith.constant 0 : i32
    %c0_i32_0 = arith.constant 0 : i32
    return %arg0, %c0_i32, %arg1 : i32, i32, i32
  }
  func.func @transform_1(%arg0: i32, %arg1: i32) -> (i32, i32, i32) {
    %c1_i32 = arith.constant 1 : i32
    %0 = arith.addi %arg1, %c1_i32 : i32
    %c1_i32_0 = arith.constant 1 : i32
    %1 = arith.muli %0, %c1_i32_0 : i32
    %c0_i32 = arith.constant 0 : i32
    %c0_i32_1 = arith.constant 0 : i32
    return %arg0, %c0_i32, %1 : i32, i32, i32
  }
  func.func @transform_2(%arg0: i32, %arg1: i32) -> (i32, i32) {
    %c0_i32 = arith.constant 0 : i32
    %c0_i32_0 = arith.constant 0 : i32
    %c0_i32_1 = arith.constant 0 : i32
    return %c0_i32, %c0_i32_0 : i32, i32
  }
  func.func @transform_3(%arg0: i32, %arg1: i32) -> (i32, i32, i32) {
    %c0_i32 = arith.constant 0 : i32
    %c0_i32_0 = arith.constant 0 : i32
    return %arg0, %c0_i32, %arg1 : i32, i32, i32
  }
  func.func @transform_4(%arg0: i32, %arg1: i32) -> (i32, i32, i32) {
    %c0_i32 = arith.constant 0 : i32
    %c0_i32_0 = arith.constant 0 : i32
    %c0_i32_1 = arith.constant 0 : i32
    return %arg0, %c0_i32, %c0_i32_0 : i32, i32, i32
  }
  func.func @transform_5(%arg0: i32, %arg1: i32) -> (i32, i32, i32) {
    %c0_i32 = arith.constant 0 : i32
    %c0_i32_0 = arith.constant 0 : i32
    %c0_i32_1 = arith.constant 0 : i32
    return %arg0, %c0_i32, %c0_i32_0 : i32, i32, i32
  }
}

module attributes {stable_mosaic.version = 11 : i64} {
  func.func @_bn_add_relu_kernel(%arg0: i32, %arg1: i32, %arg2: memref<2x8x128xf32, #tpu.memory_space<vmem>>, %arg3: memref<2x8x128xf32, #tpu.memory_space<vmem>>, %arg4: memref<8x1xf32, #tpu.memory_space<vmem>>, %arg5: memref<8x1xf32, #tpu.memory_space<vmem>>, %arg6: memref<8x1xf32, #tpu.memory_space<vmem>>, %arg7: memref<2x8x128xf32, #tpu.memory_space<vmem>>) attributes {dimension_semantics = [#tpu.dimension_semantics<parallel>, #tpu.dimension_semantics<parallel>], iteration_bounds = array<i64: 1, 1>, scalar_prefetch = 0 : i64, scratch_operands = 0 : i64, tpu.core_type = #tpu.core_type<tc>, window_params = [{transform_indices = @transform_0, window_bounds = array<i64: 2, 8, 128>}, {transform_indices = @transform_1, window_bounds = array<i64: 2, 8, 128>}, {pipeline_mode = #tpu.pipeline_mode<synchronous>, transform_indices = @transform_2, window_bounds = array<i64: 8, 1>}, {pipeline_mode = #tpu.pipeline_mode<synchronous>, transform_indices = @transform_3, window_bounds = array<i64: 8, 1>}, {pipeline_mode = #tpu.pipeline_mode<synchronous>, transform_indices = @transform_4, window_bounds = array<i64: 8, 1>}, {transform_indices = @transform_5, window_bounds = array<i64: 2, 8, 128>}]} {
    %c0 = arith.constant 0 : index
    %c0_0 = arith.constant 0 : index
    %c0_1 = arith.constant 0 : index
    %0 = vector.load %arg2[%c0, %c0_0, %c0_1] : memref<2x8x128xf32, #tpu.memory_space<vmem>>, vector<2x8x128xf32>
    %c0_2 = arith.constant 0 : index
    %c0_3 = arith.constant 0 : index
    %1 = vector.load %arg4[%c0_2, %c0_3] : memref<8x1xf32, #tpu.memory_space<vmem>>, vector<8x1xf32>
    %2 = vector.shape_cast %1 : vector<8x1xf32> to vector<1x8x1xf32>
    %3 = vector.broadcast %2 : vector<1x8x1xf32> to vector<2x8x128xf32>
    %4 = arith.mulf %0, %3 : vector<2x8x128xf32>
    %c0_4 = arith.constant 0 : index
    %c0_5 = arith.constant 0 : index
    %c0_6 = arith.constant 0 : index
    %5 = vector.load %arg3[%c0_4, %c0_5, %c0_6] : memref<2x8x128xf32, #tpu.memory_space<vmem>>, vector<2x8x128xf32>
    %c0_7 = arith.constant 0 : index
    %c0_8 = arith.constant 0 : index
    %6 = vector.load %arg5[%c0_7, %c0_8] : memref<8x1xf32, #tpu.memory_space<vmem>>, vector<8x1xf32>
    %7 = vector.shape_cast %6 : vector<8x1xf32> to vector<1x8x1xf32>
    %8 = vector.broadcast %7 : vector<1x8x1xf32> to vector<2x8x128xf32>
    %9 = arith.mulf %5, %8 : vector<2x8x128xf32>
    %10 = arith.addf %4, %9 : vector<2x8x128xf32>
    %c0_9 = arith.constant 0 : index
    %c0_10 = arith.constant 0 : index
    %11 = vector.load %arg6[%c0_9, %c0_10] : memref<8x1xf32, #tpu.memory_space<vmem>>, vector<8x1xf32>
    %12 = vector.shape_cast %11 : vector<8x1xf32> to vector<1x8x1xf32>
    %13 = vector.broadcast %12 : vector<1x8x1xf32> to vector<2x8x128xf32>
    %14 = arith.addf %10, %13 : vector<2x8x128xf32>
    %cst = arith.constant 0.000000e+00 : f32
    %15 = vector.broadcast %cst : f32 to vector<2x8x128xf32>
    %16 = arith.maximumf %14, %15 : vector<2x8x128xf32>
    %c0_11 = arith.constant 0 : index
    %c0_12 = arith.constant 0 : index
    %c0_13 = arith.constant 0 : index
    %17 = vector.load %arg7[%c0_11, %c0_12, %c0_13] : memref<2x8x128xf32, #tpu.memory_space<vmem>>, vector<2x8x128xf32>
    tpu.vector_store %arg7[%c0_11, %c0_12, %c0_13], %16 {strides = array<i32>} : memref<2x8x128xf32, #tpu.memory_space<vmem>>, vector<2x8x128xf32>,
    return
  }
  func.func @transform_0(%arg0: i32, %arg1: i32) -> (i32, i32, i32) {
    %c0_i32 = arith.constant 0 : i32
    %c0_i32_0 = arith.constant 0 : i32
    return %arg0, %c0_i32, %arg1 : i32, i32, i32
  }
  func.func @transform_1(%arg0: i32, %arg1: i32) -> (i32, i32, i32) {
    %c0_i32 = arith.constant 0 : i32
    %c0_i32_0 = arith.constant 0 : i32
    return %arg0, %c0_i32, %arg1 : i32, i32, i32
  }
  func.func @transform_2(%arg0: i32, %arg1: i32) -> (i32, i32) {
    %c0_i32 = arith.constant 0 : i32
    %c0_i32_0 = arith.constant 0 : i32
    %c0_i32_1 = arith.constant 0 : i32
    return %c0_i32, %c0_i32_0 : i32, i32
  }
  func.func @transform_3(%arg0: i32, %arg1: i32) -> (i32, i32) {
    %c0_i32 = arith.constant 0 : i32
    %c0_i32_0 = arith.constant 0 : i32
    %c0_i32_1 = arith.constant 0 : i32
    return %c0_i32, %c0_i32_0 : i32, i32
  }
  func.func @transform_4(%arg0: i32, %arg1: i32) -> (i32, i32) {
    %c0_i32 = arith.constant 0 : i32
    %c0_i32_0 = arith.constant 0 : i32
    %c0_i32_1 = arith.constant 0 : i32
    return %c0_i32, %c0_i32_0 : i32, i32
  }
  func.func @transform_5(%arg0: i32, %arg1: i32) -> (i32, i32, i32) {
    %c0_i32 = arith.constant 0 : i32
    %c0_i32_0 = arith.constant 0 : i32
    return %arg0, %c0_i32, %arg1 : i32, i32, i32
  }
}

</mosaic_0001>

<llo_original>
// kernel: res_1d_forward.5
$region0: #{res_1d_forward.5}
  #allocation0 [shape = 'u32[]', space=smem, size = 0x4, offset = 0x4, fixed_abs, tag = 'smem constant byte address 0x4 - core index']
  #allocation1 [shape = 'u32[72,128]{1,0:T(1,128)}', space=vmem, size = 0x9000, scoped, tag = 'internal scratch']
  %s0 = inlined_call_operand.vmem [shape: f32[2,8,128], index: 0, kind: input, shape index: {}, may-alias: {0,1,2}]
  %s1 = inlined_call_operand.vmem [shape: f32[2,8,128], index: 1, kind: input, shape index: {}, may-alias: {0,1,2}]
  %s2 = inlined_call_operand.vmem [shape: f32[2,8,128], index: 2, kind: input, shape index: {}, may-alias: {0,1,2}]
  %s3 = inlined_call_operand.vmem [shape: f32[8,1], index: 3, kind: input, shape index: {}]
  %s4 = inlined_call_operand.vmem [shape: f32[8,1], index: 4, kind: input, shape index: {}]
  %s5 = inlined_call_operand.vmem [shape: f32[8,24], index: 5, kind: input, shape index: {}]
  %s6 = inlined_call_operand.vmem [shape: f32[2,8,128], index: 6, kind: output, shape index: {0}]
  %s7 = inlined_call_operand.vmem [shape: f32[2,8,128], index: 7, kind: output, shape index: {1}]
  %s8 = inlined_call_operand.vmem [shape: f32[2,8,128], index: 8, kind: output, shape index: {2}]
  %9 = xla_tuple %s6, %s7, %s8
  %s10 = sld [smem:[#allocation0]]
  $region77: #{res_1d_forward.5} parent=0
    _
  %s12 = ssub.s32 1, %s10
  %s13 = scalar_select 0, %s12, %s10
  loop: start=0, step=1, limit=4
  $region2: #{res_1d_forward.5} parent=0 // loop_pre_header
    _
  $region3: #{res_1d_forward.5} parent=0 // loop_header
    %s15 = sphi 0, %s19
    %p16 = scmp.ge.s32.totalorder %s15, 4
    %s22 = sphi 0, %s34
    %s23 = sphi 0, %s30
    %s24 = sphi 0, %s22
    %s25 = sphi 0, %s23
    %s26 = sphi 0, %s24
    %s27 = sphi 0, %s25
    %s45 = sphi 0, %s47
    %s48 = sphi 0, %s45
    %s49 = sphi 0, %s48
    %s65 = sphi 0, %s49
    %s73 = sphi 0, %s75
    %s76 = sphi 0, %s73
    %s77 = sphi 0, %s76
    %s93 = sphi 0, %s77
    %s107 = sphi 0, %s109
    %s110 = sphi 0, %s107
    %s111 = sphi 0, %s110
    %s127 = sphi 0, %s111
    %s131 = sphi 0, %s131
    %s133 = sphi 0, %s131
    %s134 = sphi 0, %s133
    %s148 = sphi 0, %s134
    %s152 = sphi 0, %s152
    %s154 = sphi 0, %s152
    %s155 = sphi 0, %s154
    %s169 = sphi 0, %s155
    %s173 = sphi 0, %s173
    %s175 = sphi 0, %s173
    %s176 = sphi 0, %s175
    %s190 = sphi 0, %s176
    %s198 = sphi 0, %s200
    %s201 = sphi 0, %s198
    %s202 = sphi 0, %s201
    %s218 = sphi 0, %s202
    %s224 = sphi 0, %s226
    %s227 = sphi 0, %s224
    %s228 = sphi 0, %s227
    %s244 = sphi 0, %s228
    %s250 = sphi 0, %s252
    %s253 = sphi 0, %s250
    %s254 = sphi 0, %s253
    %s270 = sphi 0, %s254
  $region4: #{res_1d_forward.5} parent=0 // loop_header_branch
    %18 = sbr.rel (%p16) target = $region8
  $region5: #{res_1d_forward.5} parent=0 // loop_body
    %s20 = ssub.s32 %s15, 1
    %s21 = ssub.s32 %s15, 2
    %s28 = sadd.s32 1, %s23
    %p29 = scmp.ge.s32.totalorder %s28, 1
    %s30 = scalar_select %p29, 0, %s28
    %s31 = sadd.s32 1, %s22
    %s32 = scalar_select %p29, %s31, %s22
    %p33 = scmp.ge.s32.totalorder %s32, 2
    %s34 = scalar_select %p33, 0, %s32
    %s35 = ssub.s32 %s23, 1
    %p36 = scmp.gt.s32.totalorder %s35, 0
    %s37 = scalar_select %p36, %s35, 0
    %s38 = ssub.s32 %s30, 1
    %p39 = scmp.gt.s32.totalorder %s38, 0
    %s40 = scalar_select %p39, %s38, 0
    %s41 = ssub.s32 %s22, %s34
    %s42 = ssub.s32 %s37, %s40
    %s43 = sor.u32 %s41, %s42
    %p44 = scmp.eq.s32.totalorder %s43, 0
    %s46 = sadd.s32 %s45, 1
    %s47 = scalar_select %p44, %s45, %s46
    %p50 = pneg %p44
    %p51 = scmp.eq.s32.totalorder %s15, 1
    %p52 = por %p50, %p51
    %p53 = scmp.ne.s32.totalorder %s45, %s48
    %p54 = scmp.eq.s32.totalorder %s15, 0
    %p55 = por %p53, %p54
    %p56 = scmp.ne.s32.totalorder %s45, %s48
    %p57 = scmp.eq.s32.totalorder %s20, 1
    %p58 = por %p56, %p57
    %p59 = scmp.ne.s32.totalorder %s48, %s49
    %p60 = scmp.eq.s32.totalorder %s20, 0
    %p61 = por %p59, %p60
    %p62 = scmp.ne.s32.totalorder %s48, %s49
    %p63 = scmp.eq.s32.totalorder %s21, 1
    %p64 = por %p62, %p63
    %p66 = scmp.ne.s32.totalorder %s49, %s65
    %p67 = scmp.eq.s32.totalorder %s21, 0
    %p68 = por %p66, %p67
    %s69 = ssub.s32 %s22, %s34
    %s70 = ssub.s32 %s23, %s30
    %s71 = sor.u32 %s69, %s70
    %p72 = scmp.eq.s32.totalorder %s71, 0
    %s74 = sadd.s32 %s73, 1
    %s75 = scalar_select %p72, %s73, %s74
    %p78 = pneg %p72
    %p79 = scmp.eq.s32.totalorder %s15, 1
    %p80 = por %p78, %p79
    %p81 = scmp.ne.s32.totalorder %s73, %s76
    %p82 = scmp.eq.s32.totalorder %s15, 0
    %p83 = por %p81, %p82
    %p84 = scmp.ne.s32.totalorder %s73, %s76
    %p85 = scmp.eq.s32.totalorder %s20, 1
    %p86 = por %p84, %p85
    %p87 = scmp.ne.s32.totalorder %s76, %s77
    %p88 = scmp.eq.s32.totalorder %s20, 0
    %p89 = por %p87, %p88
    %p90 = scmp.ne.s32.totalorder %s76, %s77
    %p91 = scmp.eq.s32.totalorder %s21, 1
    %p92 = por %p90, %p91
    %p94 = scmp.ne.s32.totalorder %s77, %s93
    %p95 = scmp.eq.s32.totalorder %s21, 0
    %p96 = por %p94, %p95
    %s97 = sadd.s32 %s23, 1
    %p98 = scmp.lt.s32.totalorder %s97, 0
    %s99 = scalar_select %p98, %s97, 0
    %s100 = sadd.s32 %s30, 1
    %p101 = scmp.lt.s32.totalorder %s100, 0
    %s102 = scalar_select %p101, %s100, 0
    %s103 = ssub.s32 %s22, %s34
    %s104 = ssub.s32 %s99, %s102
    %s105 = sor.u32 %s103, %s104
    %p106 = scmp.eq.s32.totalorder %s105, 0
    %s108 = sadd.s32 %s107, 1
    %s109 = scalar_select %p106, %s107, %s108
    %p112 = pneg %p106
    %p113 = scmp.eq.s32.totalorder %s15, 1
    %p114 = por %p112, %p113
    %p115 = scmp.ne.s32.totalorder %s107, %s110
    %p116 = scmp.eq.s32.totalorder %s15, 0
    %p117 = por %p115, %p116
    %p118 = scmp.ne.s32.totalorder %s107, %s110
    %p119 = scmp.eq.s32.totalorder %s20, 1
    %p120 = por %p118, %p119
    %p121 = scmp.ne.s32.totalorder %s110, %s111
    %p122 = scmp.eq.s32.totalorder %s20, 0
    %p123 = por %p121, %p122
    %p124 = scmp.ne.s32.totalorder %s110, %s111
    %p125 = scmp.eq.s32.totalorder %s21, 1
    %p126 = por %p124, %p125
    %p128 = scmp.ne.s32.totalorder %s111, %s127
    %p129 = scmp.eq.s32.totalorder %s21, 0
    %p130 = por %p128, %p129
    %s132 = sadd.s32 %s131, 1
    %p135 = scmp.eq.s32.totalorder %s15, 1
    %p136 = scmp.ne.s32.totalorder %s131, %s133
    %p137 = scmp.eq.s32.totalorder %s15, 0
    %p138 = por %p136, %p137
    %p139 = scmp.ne.s32.totalorder %s131, %s133
    %p140 = scmp.eq.s32.totalorder %s20, 1
    %p141 = por %p139, %p140
    %p142 = scmp.ne.s32.totalorder %s133, %s134
    %p143 = scmp.eq.s32.totalorder %s20, 0
    %p144 = por %p142, %p143
    %p145 = scmp.ne.s32.totalorder %s133, %s134
    %p146 = scmp.eq.s32.totalorder %s21, 1
    %p147 = por %p145, %p146
    %p149 = scmp.ne.s32.totalorder %s134, %s148
    %p150 = scmp.eq.s32.totalorder %s21, 0
    %p151 = por %p149, %p150
    %s153 = sadd.s32 %s152, 1
    %p156 = scmp.eq.s32.totalorder %s15, 1
    %p157 = scmp.ne.s32.totalorder %s152, %s154
    %p158 = scmp.eq.s32.totalorder %s15, 0
    %p159 = por %p157, %p158
    %p160 = scmp.ne.s32.totalorder %s152, %s154
    %p161 = scmp.eq.s32.totalorder %s20, 1
    %p162 = por %p160, %p161
    %p163 = scmp.ne.s32.totalorder %s154, %s155
    %p164 = scmp.eq.s32.totalorder %s20, 0
    %p165 = por %p163, %p164
    %p166 = scmp.ne.s32.totalorder %s154, %s155
    %p167 = scmp.eq.s32.totalorder %s21, 1
    %p168 = por %p166, %p167
    %p170 = scmp.ne.s32.totalorder %s155, %s169
    %p171 = scmp.eq.s32.totalorder %s21, 0
    %p172 = por %p170, %p171
    %s174 = sadd.s32 %s173, 1
    %p177 = scmp.eq.s32.totalorder %s15, 1
    %p178 = scmp.ne.s32.totalorder %s173, %s175
    %p179 = scmp.eq.s32.totalorder %s15, 0
    %p180 = por %p178, %p179
    %p181 = scmp.ne.s32.totalorder %s173, %s175
    %p182 = scmp.eq.s32.totalorder %s20, 1
    %p183 = por %p181, %p182
    %p184 = scmp.ne.s32.totalorder %s175, %s176
    %p185 = scmp.eq.s32.totalorder %s20, 0
    %p186 = por %p184, %p185
    %p187 = scmp.ne.s32.totalorder %s175, %s176
    %p188 = scmp.eq.s32.totalorder %s21, 1
    %p189 = por %p187, %p188
    %p191 = scmp.ne.s32.totalorder %s176, %s190
    %p192 = scmp.eq.s32.totalorder %s21, 0
    %p193 = por %p191, %p192
    %s194 = ssub.s32 %s22, %s34
    %s195 = ssub.s32 %s23, %s30
    %s196 = sor.u32 %s194, %s195
    %p197 = scmp.eq.s32.totalorder %s196, 0
    %s199 = sadd.s32 %s198, 1
    %s200 = scalar_select %p197, %s198, %s199
    %p203 = pneg %p197
    %p204 = scmp.eq.s32.totalorder %s15, 1
    %p205 = por %p203, %p204
    %p206 = scmp.ne.s32.totalorder %s198, %s201
    %p207 = scmp.eq.s32.totalorder %s15, 0
    %p208 = por %p206, %p207
    %p209 = scmp.ne.s32.totalorder %s198, %s201
    %p210 = scmp.eq.s32.totalorder %s20, 1
    %p211 = por %p209, %p210
    %p212 = scmp.ne.s32.totalorder %s201, %s202
    %p213 = scmp.eq.s32.totalorder %s20, 0
    %p214 = por %p212, %p213
    %p215 = scmp.ne.s32.totalorder %s201, %s202
    %p216 = scmp.eq.s32.totalorder %s21, 1
    %p217 = por %p215, %p216
    %p219 = scmp.ne.s32.totalorder %s202, %s218
    %p220 = scmp.eq.s32.totalorder %s21, 0
    %p221 = por %p219, %p220
    %s222 = ssub.s32 %s22, %s34
    %p223 = scmp.eq.s32.totalorder %s222, 0
    %s225 = sadd.s32 %s224, 1
    %s226 = scalar_select %p223, %s224, %s225
    %p229 = pneg %p223
    %p230 = scmp.eq.s32.totalorder %s15, 1
    %p231 = por %p229, %p230
    %p232 = scmp.ne.s32.totalorder %s224, %s227
    %p233 = scmp.eq.s32.totalorder %s15, 0
    %p234 = por %p232, %p233
    %p235 = scmp.ne.s32.totalorder %s224, %s227
    %p236 = scmp.eq.s32.totalorder %s20, 1
    %p237 = por %p235, %p236
    %p238 = scmp.ne.s32.totalorder %s227, %s228
    %p239 = scmp.eq.s32.totalorder %s20, 0
    %p240 = por %p238, %p239
    %p241 = scmp.ne.s32.totalorder %s227, %s228
    %p242 = scmp.eq.s32.totalorder %s21, 1
    %p243 = por %p241, %p242
    %p245 = scmp.ne.s32.totalorder %s228, %s244
    %p246 = scmp.eq.s32.totalorder %s21, 0
    %p247 = por %p245, %p246
    %s248 = ssub.s32 %s22, %s34
    %p249 = scmp.eq.s32.totalorder %s248, 0
    %s251 = sadd.s32 %s250, 1
    %s252 = scalar_select %p249, %s250, %s251
    %p255 = pneg %p249
    %p256 = scmp.eq.s32.totalorder %s15, 1
    %p257 = por %p255, %p256
    %p258 = scmp.ne.s32.totalorder %s250, %s253
    %p259 = scmp.eq.s32.totalorder %s15, 0
    %p260 = por %p258, %p259
    %p261 = scmp.ne.s32.totalorder %s250, %s253
    %p262 = scmp.eq.s32.totalorder %s20, 1
    %p263 = por %p261, %p262
    %p264 = scmp.ne.s32.totalorder %s253, %s254
    %p265 = scmp.eq.s32.totalorder %s20, 0
    %p266 = por %p264, %p265
    %p267 = scmp.ne.s32.totalorder %s253, %s254
    %p268 = scmp.eq.s32.totalorder %s21, 1
    %p269 = por %p267, %p268
    %p271 = scmp.ne.s32.totalorder %s254, %s270
    %p272 = scmp.eq.s32.totalorder %s21, 0
    %p273 = por %p271, %p272
    %p274 = scmp.le.s32.totalorder 1, %s15
    %p275 = scmp.lt.s32.totalorder %s15, 3
    %p276 = pnand %p274, %p275
    %p277 = pneg %p276
    // Predicated region
    $region9: #{res_1d_forward.5} parent=5 // pred_check
      _
    $region10: #{res_1d_forward.5} parent=5 // pred_check_branch
      %279 = sbr.rel (%p276) target = $region12
    $region11: #{res_1d_forward.5} parent=5 // pred_region
      %s280 = ssub.s32 %s15, 1
      // Predicated region
      $region13: #{res_1d_forward.5} parent=11 // pred_check
        %p281 = pneg %p144
      $region14: #{res_1d_forward.5} parent=11 // pred_check_branch
        %283 = sbr.rel (%p281) target = $region16
      $region15: #{res_1d_forward.5} parent=11 // pred_region
        _
      $region16: #{res_1d_forward.5} parent=11 // pred_fallthru
        _
      // Predicated region
      $region17: #{res_1d_forward.5} parent=11 // pred_check
        %p284 = pneg %p165
      $region18: #{res_1d_forward.5} parent=11 // pred_check_branch
        %286 = sbr.rel (%p284) target = $region20
      $region19: #{res_1d_forward.5} parent=11 // pred_region
        _
      $region20: #{res_1d_forward.5} parent=11 // pred_fallthru
        _
      // Predicated region
      $region21: #{res_1d_forward.5} parent=11 // pred_check
        %p287 = pneg %p186
      $region22: #{res_1d_forward.5} parent=11 // pred_check_branch
        %289 = sbr.rel (%p287) target = $region24
      $region23: #{res_1d_forward.5} parent=11 // pred_region
        _
      $region24: #{res_1d_forward.5} parent=11 // pred_fallthru
        _
    $region12: #{res_1d_forward.5} parent=5 // pred_fallthru
      _
    %p290 = scmp.lt.s32.totalorder %s15, 2
    // Predicated region
    $region25: #{res_1d_forward.5} parent=5 // pred_check
      %p291 = pneg %p290
    $region26: #{res_1d_forward.5} parent=5 // pred_check_branch
      %293 = sbr.rel (%p291) target = $region28
    $region27: #{res_1d_forward.5} parent=5 // pred_region
      // Predicated region
      $region29: #{res_1d_forward.5} parent=27 // pred_check
        %p294 = pneg %p55
      $region30: #{res_1d_forward.5} parent=27 // pred_check_branch
        %296 = sbr.rel (%p294) target = $region32
      $region31: #{res_1d_forward.5} parent=27 // pred_region
        %s297 = ssub.s32 %s23, 1
        %p298 = scmp.gt.s32.totalorder %s297, 0
        %s299 = scalar_select %p298, %s297, 0
        %p300 = scmp.lt.s32.totalorder %s22, 1
        %s301 = scalar_select %p300, %s22, 1
        %p302 = scmp.lt.s32.totalorder %s299, 0
        %s303 = scalar_select %p302, %s299, 0
        %s304 = sadd.s32 %s303, %s301
        %s305 = smul.addr %s304, 8
        %s306 = scalar_lea.vmem %s0, %s305
        %s307 = ssub.s32 %s23, 1
        %p308 = scmp.gt.s32.totalorder %s307, 0
        %s309 = scalar_select %p308, %s307, 0
      $region32: #{res_1d_forward.5} parent=27 // pred_fallthru
        _
      // Predicated region
      $region33: #{res_1d_forward.5} parent=27 // pred_check
        %p310 = pneg %p83
      $region34: #{res_1d_forward.5} parent=27 // pred_check_branch
        %312 = sbr.rel (%p310) target = $region36
      $region35: #{res_1d_forward.5} parent=27 // pred_region
        %p313 = scmp.lt.s32.totalorder %s22, 1
        %s314 = scalar_select %p313, %s22, 1
        %p315 = scmp.lt.s32.totalorder %s23, 0
        %s316 = scalar_select %p315, %s23, 0
        %s317 = sadd.s32 %s316, %s314
        %s318 = smul.addr %s317, 8
        %s319 = scalar_lea.vmem %s1, %s318
      $region36: #{res_1d_forward.5} parent=27 // pred_fallthru
        _
      // Predicated region
      $region37: #{res_1d_forward.5} parent=27 // pred_check
        %p320 = pneg %p117
      $region38: #{res_1d_forward.5} parent=27 // pred_check_branch
        %322 = sbr.rel (%p320) target = $region40
      $region39: #{res_1d_forward.5} parent=27 // pred_region
        %s323 = sadd.s32 %s23, 1
        %p324 = scmp.lt.s32.totalorder %s323, 0
        %s325 = scalar_select %p324, %s323, 0
        %p326 = scmp.lt.s32.totalorder %s22, 1
        %s327 = scalar_select %p326, %s22, 1
        %p328 = scmp.lt.s32.totalorder %s325, 0
        %s329 = scalar_select %p328, %s325, 0
        %s330 = sadd.s32 %s329, %s327
        %s331 = smul.addr %s330, 8
        %s332 = scalar_lea.vmem %s2, %s331
        %s333 = sadd.s32 %s23, 1
        %p334 = scmp.lt.s32.totalorder %s333, 0
        %s335 = scalar_select %p334, %s333, 0
      $region40: #{res_1d_forward.5} parent=27 // pred_fallthru
        _
    $region28: #{res_1d_forward.5} parent=5 // pred_fallthru
      _
    %p336 = scmp.le.s32.totalorder 1, %s15
    %p337 = scmp.lt.s32.totalorder %s15, 3
    %p338 = pnand %p336, %p337
    %p339 = pneg %p338
    // Predicated region
    $region41: #{res_1d_forward.5} parent=5 // pred_check
      _
    $region42: #{res_1d_forward.5} parent=5 // pred_check_branch
      %341 = sbr.rel (%p338) target = $region44
    $region43: #{res_1d_forward.5} parent=5 // pred_region
      %s342 = ssub.s32 %s15, 1
      %s343 = ssub.s32 %s25, 1
      %p344 = scmp.gt.s32.totalorder %s343, 0
      %s345 = scalar_select %p344, %s343, 0
      %p346 = scmp.lt.s32.totalorder %s24, 1
      %s347 = scalar_select %p346, %s24, 1
      %p348 = scmp.lt.s32.totalorder %s345, 0
      %s349 = scalar_select %p348, %s345, 0
      %s350 = sadd.s32 %s349, %s347
      %s351 = smul.addr %s350, 8
      %s352 = scalar_lea.vmem %s0, %s351
      %p353 = pneg %p61
      %p354 = pneg %p58
      %p355 = scmp.lt.s32.totalorder %s24, 1
      %s356 = scalar_select %p355, %s24, 1
      %p357 = scmp.lt.s32.totalorder %s25, 0
      %s358 = scalar_select %p357, %s25, 0
      %s359 = sadd.s32 %s358, %s356
      %s360 = smul.addr %s359, 8
      %s361 = scalar_lea.vmem %s1, %s360
      %p362 = pneg %p89
      %p363 = pneg %p86
      %s364 = sadd.s32 %s25, 1
      %p365 = scmp.lt.s32.totalorder %s364, 0
      %s366 = scalar_select %p365, %s364, 0
      %p367 = scmp.lt.s32.totalorder %s24, 1
      %s368 = scalar_select %p367, %s24, 1
      %p369 = scmp.lt.s32.totalorder %s366, 0
      %s370 = scalar_select %p369, %s366, 0
      %s371 = sadd.s32 %s370, %s368
      %s372 = smul.addr %s371, 8
      %s373 = scalar_lea.vmem %s2, %s372
      %p374 = pneg %p123
      %p375 = pneg %p120
      %p376 = pneg %p144
      %p377 = pneg %p141
      %p378 = pneg %p165
      %p379 = pneg %p162
      %p380 = pneg %p186
      %p381 = pneg %p183
      %p382 = pneg %p214
      %p383 = pneg %p211
      %p384 = scmp.lt.s32.totalorder %s24, 1
      %s385 = scalar_select %p384, %s24, 1
      %p386 = scmp.lt.s32.totalorder %s25, 0
      %s387 = scalar_select %p386, %s25, 0
      %s388 = sadd.s32 %s387, %s385
      %s389 = smul.addr %s388, 8
      %s390 = scalar_lea.vmem %s6, %s389
      %p391 = pneg %p240
      %p392 = pneg %p237
      %p393 = scmp.lt.s32.totalorder %s24, 1
      %s394 = scalar_select %p393, %s24, 1
      %s395 = smul.addr %s394, 8
      %s396 = scalar_lea.vmem %s7, %s395
      %p397 = pneg %p266
      %p398 = pneg %p263
      %p399 = scmp.lt.s32.totalorder %s24, 1
      %s400 = scalar_select %p399, %s24, 1
      %s401 = smul.addr %s400, 8
      %s402 = scalar_lea.vmem %s8, %s401
      %s403 = ssub.s32 %s25, 1
      %p404 = scmp.gt.s32.totalorder %s403, 0
      %s405 = scalar_select %p404, %s403, 0
      %p406 = scmp.lt.s32.totalorder %s24, 1
      %s407 = scalar_select %p406, %s24, 1
      %p408 = scmp.lt.s32.totalorder %s405, 0
      %s409 = scalar_select %p408, %s405, 0
      %s410 = sadd.s32 %s409, %s407
      %s411 = smul.addr %s410, 8
      %s412 = scalar_lea.vmem %s0, %s411
      %s413 = ssub.s32 %s25, 1
      %p414 = scmp.gt.s32.totalorder %s413, 0
      %s415 = scalar_select %p414, %s413, 0
      %p416 = scmp.lt.s32.totalorder %s24, 1
      %s417 = scalar_select %p416, %s24, 1
      %p418 = scmp.lt.s32.totalorder %s25, 0
      %s419 = scalar_select %p418, %s25, 0
      %s420 = sadd.s32 %s419, %s417
      %s421 = smul.addr %s420, 8
      %s422 = scalar_lea.vmem %s1, %s421
      %s423 = sadd.s32 %s25, 1
      %p424 = scmp.lt.s32.totalorder %s423, 0
      %s425 = scalar_select %p424, %s423, 0
      %p426 = scmp.lt.s32.totalorder %s24, 1
      %s427 = scalar_select %p426, %s24, 1
      %p428 = scmp.lt.s32.totalorder %s425, 0
      %s429 = scalar_select %p428, %s425, 0
      %s430 = sadd.s32 %s429, %s427
      %s431 = smul.addr %s430, 8
      %s432 = scalar_lea.vmem %s2, %s431
      %s433 = sadd.s32 %s25, 1
      %p434 = scmp.lt.s32.totalorder %s433, 0
      %s435 = scalar_select %p434, %s433, 0
      %p436 = scmp.lt.s32.totalorder %s24, 1
      %s437 = scalar_select %p436, %s24, 1
      %p438 = scmp.lt.s32.totalorder %s25, 0
      %s439 = scalar_select %p438, %s25, 0
      %s440 = sadd.s32 %s439, %s437
      %s441 = smul.addr %s440, 8
      %s442 = scalar_lea.vmem %s6, %s441
      %p443 = scmp.lt.s32.totalorder %s24, 1
      %s444 = scalar_select %p443, %s24, 1
      %s445 = smul.addr %s444, 8
      %s446 = scalar_lea.vmem %s7, %s445
      %p447 = scmp.lt.s32.totalorder %s24, 1
      %s448 = scalar_select %p447, %s24, 1
      %s449 = smul.addr %s448, 8
      %s450 = scalar_lea.vmem %s8, %s449
      %p451 = scmp.eq.s32.totalorder %s25, 0
      // Predicated region
      $region45: #{res_1d_forward.5} parent=43 // pred_check
        %p452 = pneg %p451
      $region46: #{res_1d_forward.5} parent=43 // pred_check_branch
        %454 = sbr.rel (%p452) target = $region48
      $region47: #{res_1d_forward.5} parent=43 // pred_region
        %455 = vst [vmem:[%s446] sm:$0xff] 0.0
        %456 = vst [vmem:[%s450] sm:$0xff] 0.0
      $region48: #{res_1d_forward.5} parent=43 // pred_fallthru
        _
      %v457 = vld [vmem:[%s422] sm:$0xff]
      %v458 = vld [vmem:[%s412] sm:$0xff]
      %v459 = vld [vmem:[%s432] sm:$0xff]
      %461 = vrot.lane.b32.xlu0 %v458, 1
      %v462 = vpop.permute.xlu0 %461
      %465 = vrot.lane.b32.xlu0 %v457, 1
      %v466 = vpop.permute.xlu0 %465
      %469 = vrot.lane.b32.xlu0 %v459, 1
      %v470 = vpop.permute.xlu0 %469
      %vm472 = vcmask 7168
      %v473 = vsel %vm472, %v462, %v466
      %v474 = vsel %vm472, %v466, %v470
      %v475 = vld [vmem:[%s3] sm:$0xff]
      %477 = vset.pattern.permute.xlu0 0
      %478 = vperm.xlu0 %477, %v475
      %v479 = vpop.permute.xlu0 %478
      %v481 = vmul.f32 %v473, %v479
      %v482 = vmul.f32 %v474, %v479
      %v483 = vld [vmem:[%s4] sm:$0xff]
      %485 = vset.pattern.permute.xlu0 0
      %486 = vperm.xlu0 %485, %v483
      %v487 = vpop.permute.xlu0 %486
      %v489 = vadd.f32 %v481, %v487
      %v490 = vadd.f32 %v482, %v487
      %v491 = vmax.f32 %v489, 0.0
      %v492 = vmax.f32 %v490, 0.0
      %s493 = smul.u32 %s25, 128
      %s494 = ssub.s32 %s493, 1
      %v495 = vlaneseq
      %v496 = vand.u32 %v495, 127
      %v497 = vadd.s32 %v496, 128
      %v498 = vstv %s494
      %v499 = vadd.s32 %v498, %v496
      %v500 = vadd.s32 %v498, %v497
      %vm501 = vcmp.ge.s32.totalorder %v499, 0
      %vm502 = vcmp.ge.s32.totalorder %v500, 0
      %vm503 = vcmp.lt.s32.totalorder %v499, 16
      %vm504 = vcmp.lt.s32.totalorder %v500, 16
      %vm505 = vmand %vm501, %vm503
      %vm506 = vmand %vm502, %vm504
      %v507 = vsel %vm505, 1, 0
      %v508 = vsel %vm506, 1, 0
      %vm509 = vcmp.eq.s32.totalorder %v507, 1
      %vm510 = vcmp.eq.s32.totalorder %v508, 1
      %v511 = vsel %vm509, %v491, 0.0
      %v512 = vsel %vm510, %v492, 0.0
      %515 = vrot.lane.b32.xlu0 %v511, 127
      %v516 = vpop.permute.xlu0 %515
      %517 = vrot.lane.b32.xlu0 %v512, 127
      %v518 = vpop.permute.xlu0 %517
      %vm519 = vcmask 1039360
      %v520 = vsel %vm519, %v516, %v518
      %522 = vrot.lane.b32.xlu0 %v511, 126
      %v523 = vpop.permute.xlu0 %522
      %524 = vrot.lane.b32.xlu0 %v512, 126
      %v525 = vpop.permute.xlu0 %524
      %vm526 = vcmask 1031168
      %v527 = vsel %vm526, %v523, %v525
      %v529 = vld [vmem:[%s5] sm:$0xff]
      %vm530 = vcmask 195584
      %v532 = vsel %vm530, %v529, 0
      %534 = vmatpush.msra.mxu0 0.0
      %535 = vmatpush.msra.mxu0 0.0
      %536 = vmatpush.msra.mxu0 0.0
      %537 = vmatpush.msra.mxu0 0.0
      %538 = vmatpush.msra.mxu0 0.0
      %539 = vmatpush.msra.mxu0 0.0
      %540 = vmatpush.msra.mxu0 0.0
      %541 = vmatpush.msra.mxu0 0.0
      %542 = vmatpush.msra.mxu0 0.0
      %543 = vmatpush.msra.mxu0 0.0
      %544 = vmatpush.msra.mxu0 0.0
      %545 = vmatpush.msra.mxu0 0.0
      %546 = vmatpush.msra.mxu0 0.0
      %547 = vmatpush.msra.mxu0 %v527
      %548 = vmatpush.msra.mxu0 %v520
      %549 = vmatpush.msra.mxu0 %v511
      %550 = vmatmul.f32.gmra.mxu0 %v532
      %v551 = vpop.f32.mrf.mxu0
      %v552 = vadd.f32 0.0, %v551
      %553 = vdwg.mxu0
      %v554 = vstv %s493
      %v555 = vadd.s32 %v554, %v496
      %vm556 = vcmp.lt.s32.totalorder %v555, 16
      %v557 = vsel %vm556, 1, 0
      %vm558 = vcmp.eq.s32.totalorder %v557, 1
      %v559 = vsel %vm558, %v552, 0.0
      %v560 = vadd.f32 %v559, 0.0
      %v561 = vmul.f32 %v559, %v559
      %v562 = vadd.f32 %v561, 0.0
      %v563 = vld [vmem:[%s446] sm:$0xff]
      %v564 = vadd.f32 %v563, %v560
      %565 = vst [vmem:[%s446] sm:$0xff] %v564
      %v566 = vld [vmem:[%s450] sm:$0xff]
      %v567 = vadd.f32 %v566, %v562
      %568 = vst [vmem:[%s450] sm:$0xff] %v567
      %569 = vst [vmem:[%s442] sm:$0xff] %v552
      %p570 = scmp.lt.s32.totalorder %s24, 1
      %s571 = scalar_select %p570, %s24, 1
      %p572 = scmp.lt.s32.totalorder %s25, 0
      %s573 = scalar_select %p572, %s25, 0
      %s574 = sadd.s32 %s573, %s571
      %s575 = smul.addr %s574, 8
      %s576 = scalar_lea.vmem %s6, %s575
      %p577 = scmp.lt.s32.totalorder %s24, 1
      %s578 = scalar_select %p577, %s24, 1
      %s579 = smul.addr %s578, 8
      %s580 = scalar_lea.vmem %s7, %s579
      %p581 = scmp.lt.s32.totalorder %s24, 1
      %s582 = scalar_select %p581, %s24, 1
      %s583 = smul.addr %s582, 8
      %s584 = scalar_lea.vmem %s8, %s583
      // Predicated region
      $region49: #{res_1d_forward.5} parent=43 // pred_check
        %p585 = pneg %p211
      $region50: #{res_1d_forward.5} parent=43 // pred_check_branch
        %587 = sbr.rel (%p585) target = $region52
      $region51: #{res_1d_forward.5} parent=43 // pred_region
        _
      $region52: #{res_1d_forward.5} parent=43 // pred_fallthru
        _
      // Predicated region
      $region53: #{res_1d_forward.5} parent=43 // pred_check
        %p588 = pneg %p237
      $region54: #{res_1d_forward.5} parent=43 // pred_check_branch
        %590 = sbr.rel (%p588) target = $region56
      $region55: #{res_1d_forward.5} parent=43 // pred_region
        _
      $region56: #{res_1d_forward.5} parent=43 // pred_fallthru
        _
      // Predicated region
      $region57: #{res_1d_forward.5} parent=43 // pred_check
        %p591 = pneg %p263
      $region58: #{res_1d_forward.5} parent=43 // pred_check_branch
        %593 = sbr.rel (%p591) target = $region60
      $region59: #{res_1d_forward.5} parent=43 // pred_region
        _
      $region60: #{res_1d_forward.5} parent=43 // pred_fallthru
        _
    $region44: #{res_1d_forward.5} parent=5 // pred_fallthru
      _
    %p594 = scmp.le.s32.totalorder 2, %s15
    // Predicated region
    $region61: #{res_1d_forward.5} parent=5 // pred_check
      %p595 = pneg %p594
    $region62: #{res_1d_forward.5} parent=5 // pred_check_branch
      %597 = sbr.rel (%p595) target = $region64
    $region63: #{res_1d_forward.5} parent=5 // pred_region
      %s598 = ssub.s32 %s15, 2
      // Predicated region
      $region65: #{res_1d_forward.5} parent=63 // pred_check
        %p599 = pneg %p217
      $region66: #{res_1d_forward.5} parent=63 // pred_check_branch
        %601 = sbr.rel (%p599) target = $region68
      $region67: #{res_1d_forward.5} parent=63 // pred_region
        %p602 = scmp.lt.s32.totalorder %s26, 1
        %s603 = scalar_select %p602, %s26, 1
        %p604 = scmp.lt.s32.totalorder %s27, 0
        %s605 = scalar_select %p604, %s27, 0
        %s606 = sadd.s32 %s605, %s603
        %s607 = smul.addr %s606, 8
        %s608 = scalar_lea.vmem %s6, %s607
      $region68: #{res_1d_forward.5} parent=63 // pred_fallthru
        _
      // Predicated region
      $region69: #{res_1d_forward.5} parent=63 // pred_check
        %p609 = pneg %p243
      $region70: #{res_1d_forward.5} parent=63 // pred_check_branch
        %611 = sbr.rel (%p609) target = $region72
      $region71: #{res_1d_forward.5} parent=63 // pred_region
        %p612 = scmp.lt.s32.totalorder %s26, 1
        %s613 = scalar_select %p612, %s26, 1
        %s614 = smul.addr %s613, 8
        %s615 = scalar_lea.vmem %s7, %s614
      $region72: #{res_1d_forward.5} parent=63 // pred_fallthru
        _
      // Predicated region
      $region73: #{res_1d_forward.5} parent=63 // pred_check
        %p616 = pneg %p269
      $region74: #{res_1d_forward.5} parent=63 // pred_check_branch
        %618 = sbr.rel (%p616) target = $region76
      $region75: #{res_1d_forward.5} parent=63 // pred_region
        %p619 = scmp.lt.s32.totalorder %s26, 1
        %s620 = scalar_select %p619, %s26, 1
        %s621 = smul.addr %s620, 8
        %s622 = scalar_lea.vmem %s8, %s621
      $region76: #{res_1d_forward.5} parent=63 // pred_fallthru
        _
    $region64: #{res_1d_forward.5} parent=5 // pred_fallthru
      _
  $region6: #{res_1d_forward.5} parent=0 // loop_footer
    %s19 = sadd.s32 1, %s15
  $region7: #{res_1d_forward.5} parent=0 // loop_footer_branch
    %14 = sbr.rel target = $region3
  $region8: #{res_1d_forward.5} parent=0 // loop_exit
    _

// kernel: res_1d_forward.7
$region0: #{res_1d_forward.7}
  #allocation0 [shape = 'u32[]', space=smem, size = 0x4, offset = 0x4, fixed_abs, tag = 'smem constant byte address 0x4 - core index']
  #allocation1 [shape = 'u32[72,128]{1,0:T(1,128)}', space=vmem, size = 0x9000, scoped, tag = 'internal scratch']
  %s0 = inlined_call_operand.vmem [shape: f32[2,8,128], index: 0, kind: input, shape index: {}]
  %s1 = inlined_call_operand.vmem [shape: f32[2,8,128], index: 1, kind: input, shape index: {}]
  %s2 = inlined_call_operand.vmem [shape: f32[8,1], index: 2, kind: input, shape index: {}]
  %s3 = inlined_call_operand.vmem [shape: f32[8,1], index: 3, kind: input, shape index: {}]
  %s4 = inlined_call_operand.vmem [shape: f32[8,1], index: 4, kind: input, shape index: {}]
  %s5 = inlined_call_operand.hbm [shape: f32[2,8,16], index: 5, kind: output, shape index: {}]
  %s6 = sld [smem:[#allocation0]]
  $region30: #{res_1d_forward.7} parent=0
    _
  %s8 = ssub.s32 1, %s6
  %s9 = scalar_select 0, %s8, %s6
  $region1: #{res_1d_forward.7} parent=0
    #allocation2 [shape = 'u8[8192]{0}', space=vmem, size = 0x2000, scoped, tag = 'output window, operand 0, single buffered']
    #allocation3 [shape = 's32[1]{0}', space=sflag, size = 0x4, scoped, tag = 'scoped memory for res_1d_forward.7']
    %10 = vsyncpa [#allocation3], 0
    // Predicated region
    $region2: #{res_1d_forward.7} parent=1 // pred_check
      _
    $region3: #{res_1d_forward.7} parent=1 // pred_check_branch
      %12 = sbr.rel (0) target = $region5
    $region4: #{res_1d_forward.7} parent=1 // pred_region
      _
    $region5: #{res_1d_forward.7} parent=1 // pred_fallthru
      _
    // Predicated region
    $region6: #{res_1d_forward.7} parent=1 // pred_check
      _
    $region7: #{res_1d_forward.7} parent=1 // pred_check_branch
      %14 = sbr.rel (0) target = $region9
    $region8: #{res_1d_forward.7} parent=1 // pred_region
      _
    $region9: #{res_1d_forward.7} parent=1 // pred_fallthru
      _
    // Predicated region
    $region10: #{res_1d_forward.7} parent=1 // pred_check
      _
    $region11: #{res_1d_forward.7} parent=1 // pred_check_branch
      %16 = sbr.rel (0) target = $region13
    $region12: #{res_1d_forward.7} parent=1 // pred_region
      _
    $region13: #{res_1d_forward.7} parent=1 // pred_fallthru
      _
    // Predicated region
    $region14: #{res_1d_forward.7} parent=1 // pred_check
      _
    $region15: #{res_1d_forward.7} parent=1 // pred_check_branch
      %18 = sbr.rel (0) target = $region17
    $region16: #{res_1d_forward.7} parent=1 // pred_region
      _
    $region17: #{res_1d_forward.7} parent=1 // pred_fallthru
      _
    // Predicated region
    $region18: #{res_1d_forward.7} parent=1 // pred_check
      _
    $region19: #{res_1d_forward.7} parent=1 // pred_check_branch
      %20 = sbr.rel (0) target = $region21
    $region20: #{res_1d_forward.7} parent=1 // pred_region
      _
    $region21: #{res_1d_forward.7} parent=1 // pred_fallthru
      _
    %v21 = vld [vmem:[%s0] sm:$0xff]
    %v22 = vld [vmem:[%s0 + $0x8] sm:$0xff]
    %v23 = vld [vmem:[%s2] sm:$0xff]
    %25 = vset.pattern.permute.xlu0 0
    %26 = vperm.xlu0 %25, %v23
    %v27 = vpop.permute.xlu0 %26
    %v29 = vmul.f32 %v21, %v27
    %v30 = vmul.f32 %v22, %v27
    %v31 = vld [vmem:[%s1] sm:$0xff]
    %v32 = vld [vmem:[%s1 + $0x8] sm:$0xff]
    %v33 = vld [vmem:[%s3] sm:$0xff]
    %35 = vset.pattern.permute.xlu0 0
    %36 = vperm.xlu0 %35, %v33
    %v37 = vpop.permute.xlu0 %36
    %v39 = vmul.f32 %v31, %v37
    %v40 = vmul.f32 %v32, %v37
    %v41 = vadd.f32 %v29, %v39
    %v42 = vadd.f32 %v30, %v40
    %v43 = vld [vmem:[%s4] sm:$0xff]
    %45 = vset.pattern.permute.xlu0 0
    %46 = vperm.xlu0 %45, %v43
    %v47 = vpop.permute.xlu0 %46
    %v49 = vadd.f32 %v41, %v47
    %v50 = vadd.f32 %v42, %v47
    %v51 = vmax.f32 %v49, 0.0
    %v52 = vmax.f32 %v50, 0.0
    %53 = vst [vmem:[#allocation2] sm:$0xff] %v51
    %54 = vst [vmem:[#allocation2 + $0x8] sm:$0xff] %v52
    // Predicated region
    $region22: #{res_1d_forward.7} parent=1 // pred_check
      _
    $region23: #{res_1d_forward.7} parent=1 // pred_check_branch
      %56 = sbr.rel (0) target = $region25
    $region24: #{res_1d_forward.7} parent=1 // pred_region
      %58 = vsyncadd [#allocation3], 0
      %s59 = sshll.u32 [#allocation2], 4
      %s60 = int_to_ptr.vmem [resolvable:$true] %s59
      %s61 = sshll.u32 %s5, 4
      %s62 = int_to_ptr.hbm [resolvable:$true] %s61
      %67 = dma.vmem_to_hbm [thread:$0]  %s60, 256, %s62, [#allocation3], 128, 128, 8
    $region25: #{res_1d_forward.7} parent=1 // pred_fallthru
      _
    // Predicated region
    $region26: #{res_1d_forward.7} parent=1 // pred_check
      _
    $region27: #{res_1d_forward.7} parent=1 // pred_check_branch
      %69 = sbr.rel (0) target = $region29
    $region28: #{res_1d_forward.7} parent=1 // pred_region
      %71 = dma.done [#allocation3], 256
    $region29: #{res_1d_forward.7} parent=1 // pred_fallthru
      _
    %72 = vsyncpa [#allocation3], 1

// kernel: res_1d_forward.6
$region0: #{res_1d_forward.6}
  #allocation0 [shape = 'u32[]', space=smem, size = 0x4, offset = 0x4, fixed_abs, tag = 'smem constant byte address 0x4 - core index']
  #allocation1 [shape = 'u32[72,128]{1,0:T(1,128)}', space=vmem, size = 0x9000, scoped, tag = 'internal scratch']
  %s0 = inlined_call_operand.vmem [shape: f32[2,8,256], index: 0, kind: input, shape index: {}, may-alias: {0,1}]
  %s1 = inlined_call_operand.vmem [shape: f32[2,8,256], index: 1, kind: input, shape index: {}, may-alias: {0,1}]
  %s2 = inlined_call_operand.vmem [shape: f32[8,24], index: 2, kind: input, shape index: {}]
  %s3 = inlined_call_operand.vmem [shape: f32[2,8,128], index: 3, kind: output, shape index: {0}]
  %s4 = inlined_call_operand.vmem [shape: f32[2,8,128], index: 4, kind: output, shape index: {1}]
  %s5 = inlined_call_operand.vmem [shape: f32[2,8,128], index: 5, kind: output, shape index: {2}]
  %6 = xla_tuple %s3, %s4, %s5
  %s7 = sld [smem:[#allocation0]]
  $region65: #{res_1d_forward.6} parent=0
    _
  %s9 = ssub.s32 1, %s7
  %s10 = scalar_select 0, %s9, %s7
  loop: start=0, step=1, limit=4
  $region2: #{res_1d_forward.6} parent=0 // loop_pre_header
    _
  $region3: #{res_1d_forward.6} parent=0 // loop_header
    %s12 = sphi 0, %s16
    %p13 = scmp.ge.s32.totalorder %s12, 4
    %s19 = sphi 0, %s31
    %s20 = sphi 0, %s27
    %s21 = sphi 0, %s19
    %s22 = sphi 0, %s20
    %s23 = sphi 0, %s21
    %s24 = sphi 0, %s22
    %s36 = sphi 0, %s38
    %s39 = sphi 0, %s36
    %s40 = sphi 0, %s39
    %s56 = sphi 0, %s40
    %s66 = sphi 0, %s68
    %s69 = sphi 0, %s66
    %s70 = sphi 0, %s69
    %s86 = sphi 0, %s70
    %s90 = sphi 0, %s90
    %s92 = sphi 0, %s90
    %s93 = sphi 0, %s92
    %s107 = sphi 0, %s93
    %s115 = sphi 0, %s117
    %s118 = sphi 0, %s115
    %s119 = sphi 0, %s118
    %s135 = sphi 0, %s119
    %s141 = sphi 0, %s143
    %s144 = sphi 0, %s141
    %s145 = sphi 0, %s144
    %s161 = sphi 0, %s145
    %s167 = sphi 0, %s169
    %s170 = sphi 0, %s167
    %s171 = sphi 0, %s170
    %s187 = sphi 0, %s171
  $region4: #{res_1d_forward.6} parent=0 // loop_header_branch
    %15 = sbr.rel (%p13) target = $region8
  $region5: #{res_1d_forward.6} parent=0 // loop_body
    %s17 = ssub.s32 %s12, 1
    %s18 = ssub.s32 %s12, 2
    %s25 = sadd.s32 1, %s20
    %p26 = scmp.ge.s32.totalorder %s25, 1
    %s27 = scalar_select %p26, 0, %s25
    %s28 = sadd.s32 1, %s19
    %s29 = scalar_select %p26, %s28, %s19
    %p30 = scmp.ge.s32.totalorder %s29, 2
    %s31 = scalar_select %p30, 0, %s29
    %s32 = ssub.s32 %s19, %s31
    %s33 = ssub.s32 %s20, %s27
    %s34 = sor.u32 %s32, %s33
    %p35 = scmp.eq.s32.totalorder %s34, 0
    %s37 = sadd.s32 %s36, 1
    %s38 = scalar_select %p35, %s36, %s37
    %p41 = pneg %p35
    %p42 = scmp.eq.s32.totalorder %s12, 1
    %p43 = por %p41, %p42
    %p44 = scmp.ne.s32.totalorder %s36, %s39
    %p45 = scmp.eq.s32.totalorder %s12, 0
    %p46 = por %p44, %p45
    %p47 = scmp.ne.s32.totalorder %s36, %s39
    %p48 = scmp.eq.s32.totalorder %s17, 1
    %p49 = por %p47, %p48
    %p50 = scmp.ne.s32.totalorder %s39, %s40
    %p51 = scmp.eq.s32.totalorder %s17, 0
    %p52 = por %p50, %p51
    %p53 = scmp.ne.s32.totalorder %s39, %s40
    %p54 = scmp.eq.s32.totalorder %s18, 1
    %p55 = por %p53, %p54
    %p57 = scmp.ne.s32.totalorder %s40, %s56
    %p58 = scmp.eq.s32.totalorder %s18, 0
    %p59 = por %p57, %p58
    %s60 = sadd.s32 %s20, 1
    %s61 = sadd.s32 %s27, 1
    %s62 = ssub.s32 %s19, %s31
    %s63 = ssub.s32 %s60, %s61
    %s64 = sor.u32 %s62, %s63
    %p65 = scmp.eq.s32.totalorder %s64, 0
    %s67 = sadd.s32 %s66, 1
    %s68 = scalar_select %p65, %s66, %s67
    %p71 = pneg %p65
    %p72 = scmp.eq.s32.totalorder %s12, 1
    %p73 = por %p71, %p72
    %p74 = scmp.ne.s32.totalorder %s66, %s69
    %p75 = scmp.eq.s32.totalorder %s12, 0
    %p76 = por %p74, %p75
    %p77 = scmp.ne.s32.totalorder %s66, %s69
    %p78 = scmp.eq.s32.totalorder %s17, 1
    %p79 = por %p77, %p78
    %p80 = scmp.ne.s32.totalorder %s69, %s70
    %p81 = scmp.eq.s32.totalorder %s17, 0
    %p82 = por %p80, %p81
    %p83 = scmp.ne.s32.totalorder %s69, %s70
    %p84 = scmp.eq.s32.totalorder %s18, 1
    %p85 = por %p83, %p84
    %p87 = scmp.ne.s32.totalorder %s70, %s86
    %p88 = scmp.eq.s32.totalorder %s18, 0
    %p89 = por %p87, %p88
    %s91 = sadd.s32 %s90, 1
    %p94 = scmp.eq.s32.totalorder %s12, 1
    %p95 = scmp.ne.s32.totalorder %s90, %s92
    %p96 = scmp.eq.s32.totalorder %s12, 0
    %p97 = por %p95, %p96
    %p98 = scmp.ne.s32.totalorder %s90, %s92
    %p99 = scmp.eq.s32.totalorder %s17, 1
    %p100 = por %p98, %p99
    %p101 = scmp.ne.s32.totalorder %s92, %s93
    %p102 = scmp.eq.s32.totalorder %s17, 0
    %p103 = por %p101, %p102
    %p104 = scmp.ne.s32.totalorder %s92, %s93
    %p105 = scmp.eq.s32.totalorder %s18, 1
    %p106 = por %p104, %p105
    %p108 = scmp.ne.s32.totalorder %s93, %s107
    %p109 = scmp.eq.s32.totalorder %s18, 0
    %p110 = por %p108, %p109
    %s111 = ssub.s32 %s19, %s31
    %s112 = ssub.s32 %s20, %s27
    %s113 = sor.u32 %s111, %s112
    %p114 = scmp.eq.s32.totalorder %s113, 0
    %s116 = sadd.s32 %s115, 1
    %s117 = scalar_select %p114, %s115, %s116
    %p120 = pneg %p114
    %p121 = scmp.eq.s32.totalorder %s12, 1
    %p122 = por %p120, %p121
    %p123 = scmp.ne.s32.totalorder %s115, %s118
    %p124 = scmp.eq.s32.totalorder %s12, 0
    %p125 = por %p123, %p124
    %p126 = scmp.ne.s32.totalorder %s115, %s118
    %p127 = scmp.eq.s32.totalorder %s17, 1
    %p128 = por %p126, %p127
    %p129 = scmp.ne.s32.totalorder %s118, %s119
    %p130 = scmp.eq.s32.totalorder %s17, 0
    %p131 = por %p129, %p130
    %p132 = scmp.ne.s32.totalorder %s118, %s119
    %p133 = scmp.eq.s32.totalorder %s18, 1
    %p134 = por %p132, %p133
    %p136 = scmp.ne.s32.totalorder %s119, %s135
    %p137 = scmp.eq.s32.totalorder %s18, 0
    %p138 = por %p136, %p137
    %s139 = ssub.s32 %s19, %s31
    %p140 = scmp.eq.s32.totalorder %s139, 0
    %s142 = sadd.s32 %s141, 1
    %s143 = scalar_select %p140, %s141, %s142
    %p146 = pneg %p140
    %p147 = scmp.eq.s32.totalorder %s12, 1
    %p148 = por %p146, %p147
    %p149 = scmp.ne.s32.totalorder %s141, %s144
    %p150 = scmp.eq.s32.totalorder %s12, 0
    %p151 = por %p149, %p150
    %p152 = scmp.ne.s32.totalorder %s141, %s144
    %p153 = scmp.eq.s32.totalorder %s17, 1
    %p154 = por %p152, %p153
    %p155 = scmp.ne.s32.totalorder %s144, %s145
    %p156 = scmp.eq.s32.totalorder %s17, 0
    %p157 = por %p155, %p156
    %p158 = scmp.ne.s32.totalorder %s144, %s145
    %p159 = scmp.eq.s32.totalorder %s18, 1
    %p160 = por %p158, %p159
    %p162 = scmp.ne.s32.totalorder %s145, %s161
    %p163 = scmp.eq.s32.totalorder %s18, 0
    %p164 = por %p162, %p163
    %s165 = ssub.s32 %s19, %s31
    %p166 = scmp.eq.s32.totalorder %s165, 0
    %s168 = sadd.s32 %s167, 1
    %s169 = scalar_select %p166, %s167, %s168
    %p172 = pneg %p166
    %p173 = scmp.eq.s32.totalorder %s12, 1
    %p174 = por %p172, %p173
    %p175 = scmp.ne.s32.totalorder %s167, %s170
    %p176 = scmp.eq.s32.totalorder %s12, 0
    %p177 = por %p175, %p176
    %p178 = scmp.ne.s32.totalorder %s167, %s170
    %p179 = scmp.eq.s32.totalorder %s17, 1
    %p180 = por %p178, %p179
    %p181 = scmp.ne.s32.totalorder %s170, %s171
    %p182 = scmp.eq.s32.totalorder %s17, 0
    %p183 = por %p181, %p182
    %p184 = scmp.ne.s32.totalorder %s170, %s171
    %p185 = scmp.eq.s32.totalorder %s18, 1
    %p186 = por %p184, %p185
    %p188 = scmp.ne.s32.totalorder %s171, %s187
    %p189 = scmp.eq.s32.totalorder %s18, 0
    %p190 = por %p188, %p189
    %p191 = scmp.le.s32.totalorder 1, %s12
    %p192 = scmp.lt.s32.totalorder %s12, 3
    %p193 = pnand %p191, %p192
    %p194 = pneg %p193
    // Predicated region
    $region9: #{res_1d_forward.6} parent=5 // pred_check
      _
    $region10: #{res_1d_forward.6} parent=5 // pred_check_branch
      %196 = sbr.rel (%p193) target = $region12
    $region11: #{res_1d_forward.6} parent=5 // pred_region
      %s197 = ssub.s32 %s12, 1
      // Predicated region
      $region13: #{res_1d_forward.6} parent=11 // pred_check
        %p198 = pneg %p103
      $region14: #{res_1d_forward.6} parent=11 // pred_check_branch
        %200 = sbr.rel (%p198) target = $region16
      $region15: #{res_1d_forward.6} parent=11 // pred_region
        _
      $region16: #{res_1d_forward.6} parent=11 // pred_fallthru
        _
    $region12: #{res_1d_forward.6} parent=5 // pred_fallthru
      _
    %p201 = scmp.lt.s32.totalorder %s12, 2
    // Predicated region
    $region17: #{res_1d_forward.6} parent=5 // pred_check
      %p202 = pneg %p201
    $region18: #{res_1d_forward.6} parent=5 // pred_check_branch
      %204 = sbr.rel (%p202) target = $region20
    $region19: #{res_1d_forward.6} parent=5 // pred_region
      // Predicated region
      $region21: #{res_1d_forward.6} parent=19 // pred_check
        %p205 = pneg %p46
      $region22: #{res_1d_forward.6} parent=19 // pred_check_branch
        %207 = sbr.rel (%p205) target = $region24
      $region23: #{res_1d_forward.6} parent=19 // pred_region
        %p208 = scmp.lt.s32.totalorder %s19, 1
        %s209 = scalar_select %p208, %s19, 1
        %p210 = scmp.lt.s32.totalorder %s20, 1
        %s211 = scalar_select %p210, %s20, 1
        %s212 = smul.addr %s209, 2
        %s213 = sadd.s32 %s211, %s212
        %s214 = smul.addr %s213, 8
        %s215 = scalar_lea.vmem %s0, %s214
      $region24: #{res_1d_forward.6} parent=19 // pred_fallthru
        _
      // Predicated region
      $region25: #{res_1d_forward.6} parent=19 // pred_check
        %p216 = pneg %p76
      $region26: #{res_1d_forward.6} parent=19 // pred_check_branch
        %218 = sbr.rel (%p216) target = $region28
      $region27: #{res_1d_forward.6} parent=19 // pred_region
        %s219 = sadd.s32 %s20, 1
        %p220 = scmp.lt.s32.totalorder %s19, 1
        %s221 = scalar_select %p220, %s19, 1
        %p222 = scmp.lt.s32.totalorder %s219, 1
        %s223 = scalar_select %p222, %s219, 1
        %s224 = smul.addr %s221, 2
        %s225 = sadd.s32 %s223, %s224
        %s226 = smul.addr %s225, 8
        %s227 = scalar_lea.vmem %s1, %s226
        %s228 = sadd.s32 %s20, 1
      $region28: #{res_1d_forward.6} parent=19 // pred_fallthru
        _
    $region20: #{res_1d_forward.6} parent=5 // pred_fallthru
      _
    %p229 = scmp.le.s32.totalorder 1, %s12
    %p230 = scmp.lt.s32.totalorder %s12, 3
    %p231 = pnand %p229, %p230
    %p232 = pneg %p231
    // Predicated region
    $region29: #{res_1d_forward.6} parent=5 // pred_check
      _
    $region30: #{res_1d_forward.6} parent=5 // pred_check_branch
      %234 = sbr.rel (%p231) target = $region32
    $region31: #{res_1d_forward.6} parent=5 // pred_region
      %s235 = ssub.s32 %s12, 1
      %p236 = scmp.lt.s32.totalorder %s21, 1
      %s237 = scalar_select %p236, %s21, 1
      %p238 = scmp.lt.s32.totalorder %s22, 1
      %s239 = scalar_select %p238, %s22, 1
      %s240 = smul.addr %s237, 2
      %s241 = sadd.s32 %s239, %s240
      %s242 = smul.addr %s241, 8
      %s243 = scalar_lea.vmem %s0, %s242
      %p244 = pneg %p52
      %p245 = pneg %p49
      %s246 = sadd.s32 %s22, 1
      %p247 = scmp.lt.s32.totalorder %s21, 1
      %s248 = scalar_select %p247, %s21, 1
      %p249 = scmp.lt.s32.totalorder %s246, 1
      %s250 = scalar_select %p249, %s246, 1
      %s251 = smul.addr %s248, 2
      %s252 = sadd.s32 %s250, %s251
      %s253 = smul.addr %s252, 8
      %s254 = scalar_lea.vmem %s1, %s253
      %p255 = pneg %p82
      %p256 = pneg %p79
      %p257 = pneg %p103
      %p258 = pneg %p100
      %p259 = pneg %p131
      %p260 = pneg %p128
      %p261 = scmp.lt.s32.totalorder %s21, 1
      %s262 = scalar_select %p261, %s21, 1
      %p263 = scmp.lt.s32.totalorder %s22, 0
      %s264 = scalar_select %p263, %s22, 0
      %s265 = sadd.s32 %s264, %s262
      %s266 = smul.addr %s265, 8
      %s267 = scalar_lea.vmem %s3, %s266
      %p268 = pneg %p157
      %p269 = pneg %p154
      %p270 = scmp.lt.s32.totalorder %s21, 1
      %s271 = scalar_select %p270, %s21, 1
      %s272 = smul.addr %s271, 8
      %s273 = scalar_lea.vmem %s4, %s272
      %p274 = pneg %p183
      %p275 = pneg %p180
      %p276 = scmp.lt.s32.totalorder %s21, 1
      %s277 = scalar_select %p276, %s21, 1
      %s278 = smul.addr %s277, 8
      %s279 = scalar_lea.vmem %s5, %s278
      %p280 = scmp.lt.s32.totalorder %s21, 1
      %s281 = scalar_select %p280, %s21, 1
      %p282 = scmp.lt.s32.totalorder %s22, 1
      %s283 = scalar_select %p282, %s22, 1
      %s284 = smul.addr %s281, 2
      %s285 = sadd.s32 %s283, %s284
      %s286 = smul.addr %s285, 8
      %s287 = scalar_lea.vmem %s0, %s286
      %s288 = sadd.s32 %s22, 1
      %p289 = scmp.lt.s32.totalorder %s21, 1
      %s290 = scalar_select %p289, %s21, 1
      %p291 = scmp.lt.s32.totalorder %s288, 1
      %s292 = scalar_select %p291, %s288, 1
      %s293 = smul.addr %s290, 2
      %s294 = sadd.s32 %s292, %s293
      %s295 = smul.addr %s294, 8
      %s296 = scalar_lea.vmem %s1, %s295
      %s297 = sadd.s32 %s22, 1
      %p298 = scmp.lt.s32.totalorder %s21, 1
      %s299 = scalar_select %p298, %s21, 1
      %p300 = scmp.lt.s32.totalorder %s22, 0
      %s301 = scalar_select %p300, %s22, 0
      %s302 = sadd.s32 %s301, %s299
      %s303 = smul.addr %s302, 8
      %s304 = scalar_lea.vmem %s3, %s303
      %p305 = scmp.lt.s32.totalorder %s21, 1
      %s306 = scalar_select %p305, %s21, 1
      %s307 = smul.addr %s306, 8
      %s308 = scalar_lea.vmem %s4, %s307
      %p309 = scmp.lt.s32.totalorder %s21, 1
      %s310 = scalar_select %p309, %s21, 1
      %s311 = smul.addr %s310, 8
      %s312 = scalar_lea.vmem %s5, %s311
      %p313 = scmp.eq.s32.totalorder %s22, 0
      // Predicated region
      $region33: #{res_1d_forward.6} parent=31 // pred_check
        %p314 = pneg %p313
      $region34: #{res_1d_forward.6} parent=31 // pred_check_branch
        %316 = sbr.rel (%p314) target = $region36
      $region35: #{res_1d_forward.6} parent=31 // pred_region
        %317 = vst [vmem:[%s308] sm:$0xff] 0.0
        %318 = vst [vmem:[%s312] sm:$0xff] 0.0
      $region36: #{res_1d_forward.6} parent=31 // pred_fallthru
        _
      %v319 = vld [vmem:[%s287] sm:$0xff]
      %v320 = vld [vmem:[%s296] sm:$0xff]
      %323 = vrot.lane.b32.xlu0 %v319, 127
      %v324 = vpop.permute.xlu0 %323
      %325 = vrot.lane.b32.xlu0 %v320, 127
      %v326 = vpop.permute.xlu0 %325
      %vm327 = vcmask 1039360
      %v328 = vsel %vm327, %v324, %v326
      %330 = vrot.lane.b32.xlu0 %v319, 126
      %v331 = vpop.permute.xlu0 %330
      %332 = vrot.lane.b32.xlu0 %v320, 126
      %v333 = vpop.permute.xlu0 %332
      %vm334 = vcmask 1031168
      %v335 = vsel %vm334, %v331, %v333
      %v337 = vld [vmem:[%s2] sm:$0xff]
      %vm338 = vcmask 195584
      %v340 = vsel %vm338, %v337, 0
      %342 = vmatpush.msra.mxu0 0.0
      %343 = vmatpush.msra.mxu0 0.0
      %344 = vmatpush.msra.mxu0 0.0
      %345 = vmatpush.msra.mxu0 0.0
      %346 = vmatpush.msra.mxu0 0.0
      %347 = vmatpush.msra.mxu0 0.0
      %348 = vmatpush.msra.mxu0 0.0
      %349 = vmatpush.msra.mxu0 0.0
      %350 = vmatpush.msra.mxu0 0.0
      %351 = vmatpush.msra.mxu0 0.0
      %352 = vmatpush.msra.mxu0 0.0
      %353 = vmatpush.msra.mxu0 0.0
      %354 = vmatpush.msra.mxu0 0.0
      %355 = vmatpush.msra.mxu0 %v335
      %356 = vmatpush.msra.mxu0 %v328
      %357 = vmatpush.msra.mxu0 %v319
      %358 = vmatmul.f32.gmra.mxu0 %v340
      %v359 = vpop.f32.mrf.mxu0
      %v360 = vadd.f32 0.0, %v359
      %361 = vdwg.mxu0
      %s362 = smul.u32 %s22, 128
      %v363 = vlaneseq
      %v364 = vand.u32 %v363, 127
      %v365 = vstv %s362
      %v366 = vadd.s32 %v365, %v364
      %vm367 = vcmp.lt.s32.totalorder %v366, 16
      %v368 = vsel %vm367, 1, 0
      %vm369 = vcmp.eq.s32.totalorder %v368, 1
      %v370 = vsel %vm369, %v360, 0.0
      %v371 = vadd.f32 %v370, 0.0
      %v372 = vmul.f32 %v370, %v370
      %v373 = vadd.f32 %v372, 0.0
      %v374 = vld [vmem:[%s308] sm:$0xff]
      %v375 = vadd.f32 %v374, %v371
      %376 = vst [vmem:[%s308] sm:$0xff] %v375
      %v377 = vld [vmem:[%s312] sm:$0xff]
      %v378 = vadd.f32 %v377, %v373
      %379 = vst [vmem:[%s312] sm:$0xff] %v378
      %380 = vst [vmem:[%s304] sm:$0xff] %v360
      %p381 = scmp.lt.s32.totalorder %s21, 1
      %s382 = scalar_select %p381, %s21, 1
      %p383 = scmp.lt.s32.totalorder %s22, 0
      %s384 = scalar_select %p383, %s22, 0
      %s385 = sadd.s32 %s384, %s382
      %s386 = smul.addr %s385, 8
      %s387 = scalar_lea.vmem %s3, %s386
      %p388 = scmp.lt.s32.totalorder %s21, 1
      %s389 = scalar_select %p388, %s21, 1
      %s390 = smul.addr %s389, 8
      %s391 = scalar_lea.vmem %s4, %s390
      %p392 = scmp.lt.s32.totalorder %s21, 1
      %s393 = scalar_select %p392, %s21, 1
      %s394 = smul.addr %s393, 8
      %s395 = scalar_lea.vmem %s5, %s394
      // Predicated region
      $region37: #{res_1d_forward.6} parent=31 // pred_check
        %p396 = pneg %p128
      $region38: #{res_1d_forward.6} parent=31 // pred_check_branch
        %398 = sbr.rel (%p396) target = $region40
      $region39: #{res_1d_forward.6} parent=31 // pred_region
        _
      $region40: #{res_1d_forward.6} parent=31 // pred_fallthru
        _
      // Predicated region
      $region41: #{res_1d_forward.6} parent=31 // pred_check
        %p399 = pneg %p154
      $region42: #{res_1d_forward.6} parent=31 // pred_check_branch
        %401 = sbr.rel (%p399) target = $region44
      $region43: #{res_1d_forward.6} parent=31 // pred_region
        _
      $region44: #{res_1d_forward.6} parent=31 // pred_fallthru
        _
      // Predicated region
      $region45: #{res_1d_forward.6} parent=31 // pred_check
        %p402 = pneg %p180
      $region46: #{res_1d_forward.6} parent=31 // pred_check_branch
        %404 = sbr.rel (%p402) target = $region48
      $region47: #{res_1d_forward.6} parent=31 // pred_region
        _
      $region48: #{res_1d_forward.6} parent=31 // pred_fallthru
        _
    $region32: #{res_1d_forward.6} parent=5 // pred_fallthru
      _
    %p405 = scmp.le.s32.totalorder 2, %s12
    // Predicated region
    $region49: #{res_1d_forward.6} parent=5 // pred_check
      %p406 = pneg %p405
    $region50: #{res_1d_forward.6} parent=5 // pred_check_branch
      %408 = sbr.rel (%p406) target = $region52
    $region51: #{res_1d_forward.6} parent=5 // pred_region
      %s409 = ssub.s32 %s12, 2
      // Predicated region
      $region53: #{res_1d_forward.6} parent=51 // pred_check
        %p410 = pneg %p134
      $region54: #{res_1d_forward.6} parent=51 // pred_check_branch
        %412 = sbr.rel (%p410) target = $region56
      $region55: #{res_1d_forward.6} parent=51 // pred_region
        %p413 = scmp.lt.s32.totalorder %s23, 1
        %s414 = scalar_select %p413, %s23, 1
        %p415 = scmp.lt.s32.totalorder %s24, 0
        %s416 = scalar_select %p415, %s24, 0
        %s417 = sadd.s32 %s416, %s414
        %s418 = smul.addr %s417, 8
        %s419 = scalar_lea.vmem %s3, %s418
      $region56: #{res_1d_forward.6} parent=51 // pred_fallthru
        _
      // Predicated region
      $region57: #{res_1d_forward.6} parent=51 // pred_check
        %p420 = pneg %p160
      $region58: #{res_1d_forward.6} parent=51 // pred_check_branch
        %422 = sbr.rel (%p420) target = $region60
      $region59: #{res_1d_forward.6} parent=51 // pred_region
        %p423 = scmp.lt.s32.totalorder %s23, 1
        %s424 = scalar_select %p423, %s23, 1
        %s425 = smul.addr %s424, 8
        %s426 = scalar_lea.vmem %s4, %s425
      $region60: #{res_1d_forward.6} parent=51 // pred_fallthru
        _
      // Predicated region
      $region61: #{res_1d_forward.6} parent=51 // pred_check
        %p427 = pneg %p186
      $region62: #{res_1d_forward.6} parent=51 // pred_check_branch
        %429 = sbr.rel (%p427) target = $region64
      $region63: #{res_1d_forward.6} parent=51 // pred_region
        %p430 = scmp.lt.s32.totalorder %s23, 1
        %s431 = scalar_select %p430, %s23, 1
        %s432 = smul.addr %s431, 8
        %s433 = scalar_lea.vmem %s5, %s432
      $region64: #{res_1d_forward.6} parent=51 // pred_fallthru
        _
    $region52: #{res_1d_forward.6} parent=5 // pred_fallthru
      _
  $region6: #{res_1d_forward.6} parent=0 // loop_footer
    %s16 = sadd.s32 1, %s12
  $region7: #{res_1d_forward.6} parent=0 // loop_footer_branch
    %11 = sbr.rel target = $region3
  $region8: #{res_1d_forward.6} parent=0 // loop_exit
    _

</llo_original>
